<compile_context>
chip_gen: v5e
topology: v5e:2x2
jax: 0.10.0
libtpu: 0.0.40
codegen_flags: <defaults>
</compile_context>

<pallas_src>
import math

import jax
import jax.numpy as jnp
from jax import lax
from jax.experimental import pallas as pl
from jax.experimental.pallas import tpu as pltpu

# Small, CLIP-shaped dims: batch, seq, width, heads, layers, text-proj dim.
B, S, D, H, L, P = 2, 8, 32, 4, 2, 16
HD = D // H
FF = 4 * D
OUT_PAD = 128          # lane-dense output width (sliced back to P in the wrapper)
EPS = 1e-5
NEG_INF = -1e30


def _layernorm(x, g, b):
    mu = jnp.mean(x, axis=-1, keepdims=True)
    var = jnp.mean(jnp.square(x - mu), axis=-1, keepdims=True)
    return (x - mu) * lax.rsqrt(var + EPS) * g + b


def _bf16(x):
    return x.astype(jnp.bfloat16)


def text_encoder_kernel(eot_ref,                                   # SMEM (B,) int32 scalar prefetch
                        x_ref, pos_ref, mask_ref,                   # per-prompt activations / mask
                        wq_ref, wk_ref, wv_ref, bqkv_ref, wout_ref,  # per-layer attn weights (bf16)
                        fcw_ref, fcb_ref, prw_ref, vecs_ref,         # per-layer MLP weights / vectors
                        lnf_ref, tproj_ref,                          # final LN + text projection
                        out_ref,                                     # (1, 1, OUT_PAD) f32
                        xs_ref):                                     # VMEM scratch: residual stream
    b = pl.program_id(0)          # prompt ("parallel")
    l = pl.program_id(1)          # layer  ("arbitrary", weights streamed)
    scale = 1.0 / math.sqrt(HD)

    @pl.when(l == 0)
    def _():
        xs_ref[...] = x_ref[0] + pos_ref[...]          # token embeds + positional embedding

    x = xs_ref[...]                                    # (S, D) f32 residual stream

    vec = vecs_ref[0]                                  # (6, D) packed per-layer vectors
    g1, b1, g2, b2 = vec[0:1], vec[1:2], vec[2:3], vec[3:4]
    b_out, b_proj = vec[4:5], vec[5:6]
    bqkv = bqkv_ref[0]                                 # (3H, 1, HD) f32

    # --- multi-head self-attention (per prompt, causal) ---
    h = _layernorm(x, g1, b1)                          # ln_1, f32
    hb = jnp.broadcast_to(_bf16(h), (H, S, D))         # head-batched lhs (known-clean lowering)
    q = jnp.einsum('hsd,hdk->hsk', hb, wq_ref[0],
                   preferred_element_type=jnp.float32) + bqkv[0:H]
    k = jnp.einsum('hsd,hdk->hsk', hb, wk_ref[0],
                   preferred_element_type=jnp.float32) + bqkv[H:2 * H]
    v = jnp.einsum('hsd,hdk->hsk', hb, wv_ref[0],
                   preferred_element_type=jnp.float32) + bqkv[2 * H:3 * H]

    s = jnp.einsum('hqk,hsk->hqs', _bf16(q), _bf16(k),
                   preferred_element_type=jnp.float32) * scale
    s = s + mask_ref[...][None]                        # (S, S) causal mask, one prompt only
    s = s - jnp.max(s, axis=-1, keepdims=True)
    p = jnp.exp(s)
    p = p / jnp.sum(p, axis=-1, keepdims=True)         # exact divide (bf16 matmuls downstream)

    ctx = jnp.einsum('hqs,hsk->hqk', _bf16(p), _bf16(v),
                     preferred_element_type=jnp.float32)             # (H, S, HD)
    attn = jnp.einsum('hsk,hkd->hsd', _bf16(ctx), wout_ref[0],
                      preferred_element_type=jnp.float32)            # (H, S, D)
    x = x + jnp.sum(attn, axis=0) + b_out                            # head merge + residual

    # --- MLP (QuickGELU) ---
    h = _layernorm(x, g2, b2)                          # ln_2
    m = jnp.dot(_bf16(h), fcw_ref[0],
                preferred_element_type=jnp.float32) + fcb_ref[0]
    m = m * jax.nn.sigmoid(1.702 * m)                  # QuickGELU (CLIP)
    x = x + jnp.dot(_bf16(m), prw_ref[0],
                    preferred_element_type=jnp.float32) + b_proj

    xs_ref[...] = x                                    # carry residual stream to next layer step

    @pl.when(l == pl.num_programs(1) - 1)
    def _():
        lnf = lnf_ref[...]
        xs_ref[...] = _layernorm(xs_ref[...], lnf[0:1], lnf[1:2])    # ln_final
        idx = eot_ref[b]                                             # SMEM scalar: EOT position
        row = xs_ref[pl.ds(idx, 1), :]                               # (1, D) dynamic row gather
        out_ref[...] = jnp.dot(_bf16(row), tproj_ref[...],
                               preferred_element_type=jnp.float32)[None]   # (1, 1, OUT_PAD)


def text_encoder(prompts, tokenized_prompts, params):
    """Wrapper: argmax glue, one-time weight re-layout (bf16), pallas_call."""
    eot_idx = jnp.argmax(tokenized_prompts, axis=-1).astype(jnp.int32)       # (B,)

    # Single-prompt causal mask (no block-diagonal (B*S)^2 mask anymore).
    r = jnp.arange(S)
    mask = jnp.where(r[None, :] <= r[:, None], 0.0, NEG_INF).astype(jnp.float32)

    bf16 = jnp.bfloat16
    # --- one-time weight re-layout: pre-transposed, head-split, bf16 ---
    wqkv_t = jnp.transpose(params["wqkv"], (0, 2, 1))                         # (L, D, 3D)

    def head_split(w):                                                        # (L,D,D) -> (L,H,D,HD)
        return w.reshape(L, D, H, HD).transpose(0, 2, 1, 3)

    wq = head_split(wqkv_t[:, :, 0 * D:1 * D]).astype(bf16)
    wk = head_split(wqkv_t[:, :, 1 * D:2 * D]).astype(bf16)
    wv = head_split(wqkv_t[:, :, 2 * D:3 * D]).astype(bf16)
    bqkv = params["bqkv"][:, 0, :].reshape(L, 3 * H, 1, HD)                   # f32
    wout_h = jnp.transpose(params["wout"], (0, 2, 1)).reshape(L, H, HD, D).astype(bf16)
    fc_wt = jnp.transpose(params["fc_w"], (0, 2, 1)).astype(bf16)             # (L, D, 4D)
    pr_wt = jnp.transpose(params["pr_w"], (0, 2, 1)).astype(bf16)             # (L, 4D, D)
    fc_b = params["fc_b"]                                                     # (L, 1, 4D) f32
    vecs = jnp.concatenate([params["ln1_g"], params["ln1_b"],
                            params["ln2_g"], params["ln2_b"],
                            params["bout"], params["pr_b"]], axis=1)          # (L, 6, D) f32
    lnf = jnp.concatenate([params["lnf_g"], params["lnf_b"]], axis=0)         # (2, D) f32
    tproj_pad = jnp.zeros((D, OUT_PAD), bf16).at[:, :P].set(params["tproj"].astype(bf16))

    x = prompts.astype(jnp.float32)                                           # (B, S, D)
    pos = params["pos"].astype(jnp.float32)                                   # (S, D)

    grid_spec = pltpu.PrefetchScalarGridSpec(
        num_scalar_prefetch=1,                                   # eot_idx -> SMEM
        grid=(B, L),                                             # (prompt, layer)
        in_specs=[
            pl.BlockSpec((1, S, D), lambda b, l, eot: (b, 0, 0)),            # x
            pl.BlockSpec((S, D), lambda b, l, eot: (0, 0)),                  # pos
            pl.BlockSpec((S, S), lambda b, l, eot: (0, 0)),                  # mask
            pl.BlockSpec((1, H, D, HD), lambda b, l, eot: (l, 0, 0, 0)),     # wq  (per layer)
            pl.BlockSpec((1, H, D, HD), lambda b, l, eot: (l, 0, 0, 0)),     # wk
            pl.BlockSpec((1, H, D, HD), lambda b, l, eot: (l, 0, 0, 0)),     # wv
            pl.BlockSpec((1, 3 * H, 1, HD), lambda b, l, eot: (l, 0, 0, 0)), # bqkv
            pl.BlockSpec((1, H, HD, D), lambda b, l, eot: (l, 0, 0, 0)),     # wout
            pl.BlockSpec((1, D, FF), lambda b, l, eot: (l, 0, 0)),           # fc_w
            pl.BlockSpec((1, 1, FF), lambda b, l, eot: (l, 0, 0)),           # fc_b
            pl.BlockSpec((1, FF, D), lambda b, l, eot: (l, 0, 0)),           # proj_w
            pl.BlockSpec((1, 6, D), lambda b, l, eot: (l, 0, 0)),            # packed vectors
            pl.BlockSpec((2, D), lambda b, l, eot: (0, 0)),                  # ln_final
            pl.BlockSpec((D, OUT_PAD), lambda b, l, eot: (0, 0)),            # text projection
        ],
        out_specs=pl.BlockSpec((1, 1, OUT_PAD), lambda b, l, eot: (b, 0, 0)),
        scratch_shapes=[pltpu.VMEM((S, D), jnp.float32)],        # residual stream carry
    )

    out = pl.pallas_call(
        text_encoder_kernel,
        out_shape=jax.ShapeDtypeStruct((B, 1, OUT_PAD), jnp.float32),
        grid_spec=grid_spec,
        compiler_params=pltpu.CompilerParams(
            dimension_semantics=("parallel", "arbitrary"),
            vmem_limit_bytes=32 * 1024 * 1024),
    )(eot_idx, x, pos, mask, wq, wk, wv, bqkv, wout_h,
      fc_wt, fc_b, pr_wt, vecs, lnf, tproj_pad)

    return out[:, 0, :P].astype(jnp.float32)


def ref_forward(prompts, tokenized_prompts, params):
    """Pure-JAX f32 reference mirroring the PyTorch module with the original
    (PyTorch-layout) parameters — independent of the kernel's re-layout."""
    eot_idx = jnp.argmax(tokenized_prompts, axis=-1)
    scale = 1.0 / math.sqrt(HD)
    r = jnp.arange(S)
    mask = jnp.where(r[None, :] <= r[:, None], 0.0, NEG_INF).astype(jnp.float32)

    def one_prompt(xp):
        x = xp + params["pos"]
        for l in range(L):
            h = _layernorm(x, params["ln1_g"][l], params["ln1_b"][l])
            qkv = h @ params["wqkv"][l].T + params["bqkv"][l]
            q, k, v = qkv[:, :D], qkv[:, D:2 * D], qkv[:, 2 * D:]
            q = q.reshape(S, H, HD).transpose(1, 0, 2)
            k = k.reshape(S, H, HD).transpose(1, 0, 2)
            v = v.reshape(S, H, HD).transpose(1, 0, 2)
            s = jnp.einsum('hqe,hke->hqk', q, k) * scale + mask[None]
            p = jax.nn.softmax(s, axis=-1)
            ctx = jnp.einsum('hqk,hke->hqe', p, v).transpose(1, 0, 2).reshape(S, D)
            x = x + ctx @ params["wout"][l].T + params["bout"][l]
            h = _layernorm(x, params["ln2_g"][l], params["ln2_b"][l])
            h = h @ params["fc_w"][l].T + params["fc_b"][l]
            h = h * jax.nn.sigmoid(1.702 * h)
            x = x + h @ params["pr_w"][l].T + params["pr_b"][l]
        return _layernorm(x, params["lnf_g"], params["lnf_b"])

    xs = jax.vmap(one_prompt)(prompts)                       # (B, S, D)
    eot = xs[jnp.arange(B), eot_idx]                         # (B, D)
    return eot @ params["tproj"]                             # (B, P)


def init_params(key):
    ks = list(jax.random.split(key, 16))
    it = iter(ks)

    def nrm(shape, s=0.02):
        return jax.random.normal(next(it), shape, jnp.float32) * s

    return dict(
        pos=nrm((S, D)),
        ln1_g=1.0 + nrm((L, 1, D), 0.1), ln1_b=nrm((L, 1, D), 0.1),
        wqkv=nrm((L, 3 * D, D)),         bqkv=nrm((L, 1, 3 * D), 0.02),
        wout=nrm((L, D, D)),             bout=nrm((L, 1, D), 0.02),
        ln2_g=1.0 + nrm((L, 1, D), 0.1), ln2_b=nrm((L, 1, D), 0.1),
        fc_w=nrm((L, 4 * D, D)),         fc_b=nrm((L, 1, 4 * D), 0.02),
        pr_w=nrm((L, D, 4 * D)),         pr_b=nrm((L, 1, D), 0.02),
        lnf_g=1.0 + nrm((1, D), 0.1),    lnf_b=nrm((1, D), 0.1),
        tproj=nrm((D, P)),
    )


if __name__ == "__main__":
    key = jax.random.PRNGKey(0)
    kp, kt, kw = jax.random.split(key, 3)

    prompts = jax.random.normal(kp, (B, S, D), jnp.float32)
    tokenized_prompts = jax.random.randint(kt, (B, S), 1, 100, dtype=jnp.int32)
    # plant an EOT token (largest id) at a distinct position per prompt
    eot_pos = jnp.array([S - 2, S - 3], dtype=jnp.int32)
    tokenized_prompts = tokenized_prompts.at[jnp.arange(B), eot_pos].set(999)

    params = init_params(kw)

    run = jax.jit(text_encoder)
    out = jax.block_until_ready(run(prompts, tokenized_prompts, params))
    ref = jax.block_until_ready(ref_forward(prompts, tokenized_prompts, params))

    assert out.shape == (B, P), out.shape
    max_err = float(jnp.max(jnp.abs(out - ref)))
    # bf16 MXU operands vs f32 reference: expect ~1e-3 abs error at 0.1-scale outputs.
    assert jnp.allclose(out, ref, atol=1e-2, rtol=1e-2), f"max err {max_err}"
    print("KERNEL_OK")
</pallas_src>

<mosaic_0001>
module attributes {stable_mosaic.version = 11 : i64} {
  func.func @text_encoder_kernel(%arg0: i32, %arg1: i32, %arg2: memref<2xi32, #tpu.memory_space<smem>>, %arg3: memref<1x8x32xf32, #tpu.memory_space<vmem>>, %arg4: memref<8x32xf32, #tpu.memory_space<vmem>>, %arg5: memref<8x8xf32, #tpu.memory_space<vmem>>, %arg6: memref<1x4x32x8xbf16, #tpu.memory_space<vmem>>, %arg7: memref<1x4x32x8xbf16, #tpu.memory_space<vmem>>, %arg8: memref<1x4x32x8xbf16, #tpu.memory_space<vmem>>, %arg9: memref<1x12x1x8xf32, #tpu.memory_space<vmem>>, %arg10: memref<1x4x8x32xbf16, #tpu.memory_space<vmem>>, %arg11: memref<1x32x128xbf16, #tpu.memory_space<vmem>>, %arg12: memref<1x1x128xf32, #tpu.memory_space<vmem>>, %arg13: memref<1x128x32xbf16, #tpu.memory_space<vmem>>, %arg14: memref<1x6x32xf32, #tpu.memory_space<vmem>>, %arg15: memref<2x32xf32, #tpu.memory_space<vmem>>, %arg16: memref<32x128xbf16, #tpu.memory_space<vmem>>, %arg17: memref<1x1x128xf32, #tpu.memory_space<vmem>>, %arg18: memref<8x32xf32, #tpu.memory_space<vmem>>) attributes {dimension_semantics = [#tpu.dimension_semantics<parallel>, #tpu.dimension_semantics<arbitrary>], iteration_bounds = array<i64: 2, 2>, scalar_prefetch = 1 : i64, scratch_operands = 1 : i64, tpu.core_type = #tpu.core_type<tc>, window_params = [{transform_indices = @transform_0, window_bounds = array<i64: 1, 8, 32>}, {pipeline_mode = #tpu.pipeline_mode<synchronous>, transform_indices = @transform_1, window_bounds = array<i64: 8, 32>}, {pipeline_mode = #tpu.pipeline_mode<synchronous>, transform_indices = @transform_2, window_bounds = array<i64: 8, 8>}, {transform_indices = @transform_3, window_bounds = array<i64: 1, 4, 32, 8>}, {transform_indices = @transform_4, window_bounds = array<i64: 1, 4, 32, 8>}, {transform_indices = @transform_5, window_bounds = array<i64: 1, 4, 32, 8>}, {transform_indices = @transform_6, window_bounds = array<i64: 1, 12, 1, 8>}, {transform_indices = @transform_7, window_bounds = array<i64: 1, 4, 8, 32>}, {transform_indices = @transform_8, window_bounds = array<i64: 1, 32, 128>}, {transform_indices = @transform_9, window_bounds = array<i64: 1, 1, 128>}, {transform_indices = @transform_10, window_bounds = array<i64: 1, 128, 32>}, {transform_indices = @transform_11, window_bounds = array<i64: 1, 6, 32>}, {pipeline_mode = #tpu.pipeline_mode<synchronous>, transform_indices = @transform_12, window_bounds = array<i64: 2, 32>}, {pipeline_mode = #tpu.pipeline_mode<synchronous>, transform_indices = @transform_13, window_bounds = array<i64: 32, 128>}, {transform_indices = @transform_14, window_bounds = array<i64: 1, 1, 128>}]} {
    %c0_i32 = arith.constant 0 : i32
    %0 = arith.cmpi eq, %arg1, %c0_i32 : i32
    %1 = arith.extui %0 : i1 to i32
    %c0_i32_0 = arith.constant 0 : i32
    %2 = arith.cmpi ne, %1, %c0_i32_0 : i32
    scf.if %2 {
      %c0_62 = arith.constant 0 : index
      %c0_63 = arith.constant 0 : index
      %c0_64 = arith.constant 0 : index
      %135 = vector.load %arg3[%c0_62, %c0_63, %c0_64] : memref<1x8x32xf32, #tpu.memory_space<vmem>>, vector<1x8x32xf32>
      %136 = vector.shape_cast %135 : vector<1x8x32xf32> to vector<8x32xf32>
      %c0_65 = arith.constant 0 : index
      %c0_66 = arith.constant 0 : index
      %137 = vector.load %arg4[%c0_65, %c0_66] : memref<8x32xf32, #tpu.memory_space<vmem>>, vector<8x32xf32>
      %138 = arith.addf %136, %137 : vector<8x32xf32>
      %c0_67 = arith.constant 0 : index
      %c0_68 = arith.constant 0 : index
      %139 = vector.load %arg18[%c0_67, %c0_68] : memref<8x32xf32, #tpu.memory_space<vmem>>, vector<8x32xf32>
      tpu.vector_store %arg18[%c0_67, %c0_68], %138 {strides = array<i32>} : memref<8x32xf32, #tpu.memory_space<vmem>>, vector<8x32xf32>,
    } else {
    }
    %c0 = arith.constant 0 : index
    %c0_1 = arith.constant 0 : index
    %3 = vector.load %arg18[%c0, %c0_1] : memref<8x32xf32, #tpu.memory_space<vmem>>, vector<8x32xf32>
    %c0_2 = arith.constant 0 : index
    %c0_3 = arith.constant 0 : index
    %c0_4 = arith.constant 0 : index
    %4 = vector.load %arg14[%c0_2, %c0_3, %c0_4] : memref<1x6x32xf32, #tpu.memory_space<vmem>>, vector<1x6x32xf32>
    %5 = vector.shape_cast %4 : vector<1x6x32xf32> to vector<6x32xf32>
    %6 = vector.extract_strided_slice %5 {offsets = [0, 0], sizes = [1, 32], strides = [1, 1]} : vector<6x32xf32> to vector<1x32xf32>
    %7 = vector.extract_strided_slice %5 {offsets = [1, 0], sizes = [1, 32], strides = [1, 1]} : vector<6x32xf32> to vector<1x32xf32>
    %8 = vector.extract_strided_slice %5 {offsets = [2, 0], sizes = [1, 32], strides = [1, 1]} : vector<6x32xf32> to vector<1x32xf32>
    %9 = vector.extract_strided_slice %5 {offsets = [3, 0], sizes = [1, 32], strides = [1, 1]} : vector<6x32xf32> to vector<1x32xf32>
    %10 = vector.extract_strided_slice %5 {offsets = [4, 0], sizes = [1, 32], strides = [1, 1]} : vector<6x32xf32> to vector<1x32xf32>
    %11 = vector.extract_strided_slice %5 {offsets = [5, 0], sizes = [1, 32], strides = [1, 1]} : vector<6x32xf32> to vector<1x32xf32>
    %c0_5 = arith.constant 0 : index
    %c0_6 = arith.constant 0 : index
    %c0_7 = arith.constant 0 : index
    %c0_8 = arith.constant 0 : index
    %12 = vector.load %arg9[%c0_5, %c0_6, %c0_7, %c0_8] : memref<1x12x1x8xf32, #tpu.memory_space<vmem>>, vector<1x12x1x8xf32>
    %13 = vector.shape_cast %12 : vector<1x12x1x8xf32> to vector<12x1x8xf32>
    %cst = arith.constant dense<0.000000e+00> : vector<8xf32>
    %14 = vector.multi_reduction <add>, %3, %cst [1] : vector<8x32xf32> to vector<8xf32>
    %15 = vector.shape_cast %14 : vector<8xf32> to vector<8x1xf32>
    %cst_9 = arith.constant 3.200000e+01 : f32
    %16 = vector.broadcast %cst_9 : f32 to vector<8x1xf32>
    %17 = arith.divf %15, %16 : vector<8x1xf32>
    %18 = vector.broadcast %17 : vector<8x1xf32> to vector<8x32xf32>
    %19 = arith.subf %3, %18 : vector<8x32xf32>
    %20 = arith.mulf %19, %19 : vector<8x32xf32>
    %cst_10 = arith.constant dense<0.000000e+00> : vector<8xf32>
    %21 = vector.multi_reduction <add>, %20, %cst_10 [1] : vector<8x32xf32> to vector<8xf32>
    %22 = vector.shape_cast %21 : vector<8xf32> to vector<8x1xf32>
    %cst_11 = arith.constant 3.200000e+01 : f32
    %23 = vector.broadcast %cst_11 : f32 to vector<8x1xf32>
    %24 = arith.divf %22, %23 : vector<8x1xf32>
    %25 = vector.broadcast %17 : vector<8x1xf32> to vector<8x32xf32>
    %26 = arith.subf %3, %25 : vector<8x32xf32>
    %cst_12 = arith.constant 9.99999974E-6 : f32
    %27 = vector.broadcast %cst_12 : f32 to vector<8x1xf32>
    %28 = arith.addf %24, %27 : vector<8x1xf32>
    %29 = math.rsqrt %28 : vector<8x1xf32>
    %30 = vector.broadcast %29 : vector<8x1xf32> to vector<8x32xf32>
    %31 = arith.mulf %26, %30 : vector<8x32xf32>
    %32 = vector.broadcast %6 : vector<1x32xf32> to vector<8x32xf32>
    %33 = arith.mulf %31, %32 : vector<8x32xf32>
    %34 = vector.broadcast %7 : vector<1x32xf32> to vector<8x32xf32>
    %35 = arith.addf %33, %34 : vector<8x32xf32>
    %36 = arith.truncf %35 : vector<8x32xf32> to vector<8x32xbf16>
    %37 = vector.shape_cast %36 : vector<8x32xbf16> to vector<1x8x32xbf16>
    %38 = vector.broadcast %37 : vector<1x8x32xbf16> to vector<4x8x32xbf16>
    %c0_13 = arith.constant 0 : index
    %c0_14 = arith.constant 0 : index
    %c0_15 = arith.constant 0 : index
    %c0_16 = arith.constant 0 : index
    %39 = vector.load %arg6[%c0_13, %c0_14, %c0_15, %c0_16] : memref<1x4x32x8xbf16, #tpu.memory_space<vmem>>, vector<1x4x32x8xbf16>
    %40 = vector.shape_cast %39 : vector<1x4x32x8xbf16> to vector<4x32x8xbf16>
    "tpu.trace_start"() <{level = 10 : i32, message = "hsd,hdk->hsk"}> : () -> ()
    %cst_17 = arith.constant dense<0.000000e+00> : vector<4x8x8xf32>
    %41 = tpu.matmul %38, %40, %cst_17 {dimension_numbers = #tpu.dot_dimension_numbers<[2], [1], [1], [2], [0, 0, 0, 1, 1, 2], [0], [0]>} : vector<4x8x32xbf16>, vector<4x32x8xbf16>, vector<4x8x8xf32> -> vector<4x8x8xf32>
    "tpu.trace_stop"() : () -> ()
    %42 = vector.extract_strided_slice %13 {offsets = [0, 0, 0], sizes = [4, 1, 8], strides = [1, 1, 1]} : vector<12x1x8xf32> to vector<4x1x8xf32>
    %43 = vector.broadcast %42 : vector<4x1x8xf32> to vector<4x8x8xf32>
    %44 = arith.addf %41, %43 : vector<4x8x8xf32>
    %c0_18 = arith.constant 0 : index
    %c0_19 = arith.constant 0 : index
    %c0_20 = arith.constant 0 : index
    %c0_21 = arith.constant 0 : index
    %45 = vector.load %arg7[%c0_18, %c0_19, %c0_20, %c0_21] : memref<1x4x32x8xbf16, #tpu.memory_space<vmem>>, vector<1x4x32x8xbf16>
    %46 = vector.shape_cast %45 : vector<1x4x32x8xbf16> to vector<4x32x8xbf16>
    "tpu.trace_start"() <{level = 10 : i32, message = "hsd,hdk->hsk"}> : () -> ()
    %cst_22 = arith.constant dense<0.000000e+00> : vector<4x8x8xf32>
    %47 = tpu.matmul %38, %46, %cst_22 {dimension_numbers = #tpu.dot_dimension_numbers<[2], [1], [1], [2], [0, 0, 0, 1, 1, 2], [0], [0]>} : vector<4x8x32xbf16>, vector<4x32x8xbf16>, vector<4x8x8xf32> -> vector<4x8x8xf32>
    "tpu.trace_stop"() : () -> ()
    %48 = vector.extract_strided_slice %13 {offsets = [4, 0, 0], sizes = [4, 1, 8], strides = [1, 1, 1]} : vector<12x1x8xf32> to vector<4x1x8xf32>
    %49 = vector.broadcast %48 : vector<4x1x8xf32> to vector<4x8x8xf32>
    %50 = arith.addf %47, %49 : vector<4x8x8xf32>
    %c0_23 = arith.constant 0 : index
    %c0_24 = arith.constant 0 : index
    %c0_25 = arith.constant 0 : index
    %c0_26 = arith.constant 0 : index
    %51 = vector.load %arg8[%c0_23, %c0_24, %c0_25, %c0_26] : memref<1x4x32x8xbf16, #tpu.memory_space<vmem>>, vector<1x4x32x8xbf16>
    %52 = vector.shape_cast %51 : vector<1x4x32x8xbf16> to vector<4x32x8xbf16>
    "tpu.trace_start"() <{level = 10 : i32, message = "hsd,hdk->hsk"}> : () -> ()
    %cst_27 = arith.constant dense<0.000000e+00> : vector<4x8x8xf32>
    %53 = tpu.matmul %38, %52, %cst_27 {dimension_numbers = #tpu.dot_dimension_numbers<[2], [1], [1], [2], [0, 0, 0, 1, 1, 2], [0], [0]>} : vector<4x8x32xbf16>, vector<4x32x8xbf16>, vector<4x8x8xf32> -> vector<4x8x8xf32>
    "tpu.trace_stop"() : () -> ()
    %54 = vector.extract_strided_slice %13 {offsets = [8, 0, 0], sizes = [4, 1, 8], strides = [1, 1, 1]} : vector<12x1x8xf32> to vector<4x1x8xf32>
    %55 = vector.broadcast %54 : vector<4x1x8xf32> to vector<4x8x8xf32>
    %56 = arith.addf %53, %55 : vector<4x8x8xf32>
    %57 = arith.truncf %44 : vector<4x8x8xf32> to vector<4x8x8xbf16>
    %58 = arith.truncf %50 : vector<4x8x8xf32> to vector<4x8x8xbf16>
    "tpu.trace_start"() <{level = 10 : i32, message = "hqk,hsk->hqs"}> : () -> ()
    %cst_28 = arith.constant dense<0.000000e+00> : vector<4x8x8xf32>
    %59 = tpu.matmul %57, %58, %cst_28 {dimension_numbers = #tpu.dot_dimension_numbers<[2], [2], [1], [1], [0, 0, 0, 1, 1, 1], [0], [0]>} : vector<4x8x8xbf16>, vector<4x8x8xbf16>, vector<4x8x8xf32> -> vector<4x8x8xf32>
    "tpu.trace_stop"() : () -> ()
    %cst_29 = arith.constant 0.353553385 : f32
    %60 = vector.broadcast %cst_29 : f32 to vector<4x8x8xf32>
    %61 = arith.mulf %59, %60 : vector<4x8x8xf32>
    %c0_30 = arith.constant 0 : index
    %c0_31 = arith.constant 0 : index
    %62 = vector.load %arg5[%c0_30, %c0_31] : memref<8x8xf32, #tpu.memory_space<vmem>>, vector<8x8xf32>
    %63 = vector.shape_cast %62 : vector<8x8xf32> to vector<1x8x8xf32>
    %64 = vector.broadcast %63 : vector<1x8x8xf32> to vector<4x8x8xf32>
    %65 = arith.addf %61, %64 : vector<4x8x8xf32>
    %cst_32 = arith.constant dense<0xFF800000> : vector<4x8xf32>
    %66 = vector.multi_reduction <maximumf>, %65, %cst_32 [2] : vector<4x8x8xf32> to vector<4x8xf32>
    %67 = vector.shape_cast %66 : vector<4x8xf32> to vector<4x8x1xf32>
    %68 = vector.broadcast %67 : vector<4x8x1xf32> to vector<4x8x8xf32>
    %69 = arith.subf %65, %68 : vector<4x8x8xf32>
    %70 = math.exp %69 : vector<4x8x8xf32>
    %cst_33 = arith.constant dense<0.000000e+00> : vector<4x8xf32>
    %71 = vector.multi_reduction <add>, %70, %cst_33 [2] : vector<4x8x8xf32> to vector<4x8xf32>
    %72 = vector.shape_cast %71 : vector<4x8xf32> to vector<4x8x1xf32>
    %73 = vector.broadcast %72 : vector<4x8x1xf32> to vector<4x8x8xf32>
    %74 = arith.divf %70, %73 : vector<4x8x8xf32>
    %75 = arith.truncf %74 : vector<4x8x8xf32> to vector<4x8x8xbf16>
    %76 = arith.truncf %56 : vector<4x8x8xf32> to vector<4x8x8xbf16>
    "tpu.trace_start"() <{level = 10 : i32, message = "hqs,hsk->hqk"}> : () -> ()
    %cst_34 = arith.constant dense<0.000000e+00> : vector<4x8x8xf32>
    %77 = tpu.matmul %75, %76, %cst_34 {dimension_numbers = #tpu.dot_dimension_numbers<[2], [1], [1], [2], [0, 0, 0, 1, 1, 2], [0], [0]>} : vector<4x8x8xbf16>, vector<4x8x8xbf16>, vector<4x8x8xf32> -> vector<4x8x8xf32>
    "tpu.trace_stop"() : () -> ()
    %78 = arith.truncf %77 : vector<4x8x8xf32> to vector<4x8x8xbf16>
    %c0_35 = arith.constant 0 : index
    %c0_36 = arith.constant 0 : index
    %c0_37 = arith.constant 0 : index
    %c0_38 = arith.constant 0 : index
    %79 = vector.load %arg10[%c0_35, %c0_36, %c0_37, %c0_38] : memref<1x4x8x32xbf16, #tpu.memory_space<vmem>>, vector<1x4x8x32xbf16>
    %80 = vector.shape_cast %79 : vector<1x4x8x32xbf16> to vector<4x8x32xbf16>
    "tpu.trace_start"() <{level = 10 : i32, message = "hsk,hkd->hsd"}> : () -> ()
    %cst_39 = arith.constant dense<0.000000e+00> : vector<4x8x32xf32>
    %81 = tpu.matmul %78, %80, %cst_39 {dimension_numbers = #tpu.dot_dimension_numbers<[2], [1], [1], [2], [0, 0, 0, 1, 1, 2], [0], [0]>} : vector<4x8x8xbf16>, vector<4x8x32xbf16>, vector<4x8x32xf32> -> vector<4x8x32xf32>
    "tpu.trace_stop"() : () -> ()
    %cst_40 = arith.constant dense<0.000000e+00> : vector<8x32xf32>
    %82 = vector.multi_reduction <add>, %81, %cst_40 [0] : vector<4x8x32xf32> to vector<8x32xf32>
    %83 = arith.addf %3, %82 : vector<8x32xf32>
    %84 = vector.broadcast %10 : vector<1x32xf32> to vector<8x32xf32>
    %85 = arith.addf %83, %84 : vector<8x32xf32>
    %cst_41 = arith.constant dense<0.000000e+00> : vector<8xf32>
    %86 = vector.multi_reduction <add>, %85, %cst_41 [1] : vector<8x32xf32> to vector<8xf32>
    %87 = vector.shape_cast %86 : vector<8xf32> to vector<8x1xf32>
    %cst_42 = arith.constant 3.200000e+01 : f32
    %88 = vector.broadcast %cst_42 : f32 to vector<8x1xf32>
    %89 = arith.divf %87, %88 : vector<8x1xf32>
    %90 = vector.broadcast %89 : vector<8x1xf32> to vector<8x32xf32>
    %91 = arith.subf %85, %90 : vector<8x32xf32>
    %92 = arith.mulf %91, %91 : vector<8x32xf32>
    %cst_43 = arith.constant dense<0.000000e+00> : vector<8xf32>
    %93 = vector.multi_reduction <add>, %92, %cst_43 [1] : vector<8x32xf32> to vector<8xf32>
    %94 = vector.shape_cast %93 : vector<8xf32> to vector<8x1xf32>
    %cst_44 = arith.constant 3.200000e+01 : f32
    %95 = vector.broadcast %cst_44 : f32 to vector<8x1xf32>
    %96 = arith.divf %94, %95 : vector<8x1xf32>
    %97 = vector.broadcast %89 : vector<8x1xf32> to vector<8x32xf32>
    %98 = arith.subf %85, %97 : vector<8x32xf32>
    %cst_45 = arith.constant 9.99999974E-6 : f32
    %99 = vector.broadcast %cst_45 : f32 to vector<8x1xf32>
    %100 = arith.addf %96, %99 : vector<8x1xf32>
    %101 = math.rsqrt %100 : vector<8x1xf32>
    %102 = vector.broadcast %101 : vector<8x1xf32> to vector<8x32xf32>
    %103 = arith.mulf %98, %102 : vector<8x32xf32>
    %104 = vector.broadcast %8 : vector<1x32xf32> to vector<8x32xf32>
    %105 = arith.mulf %103, %104 : vector<8x32xf32>
    %106 = vector.broadcast %9 : vector<1x32xf32> to vector<8x32xf32>
    %107 = arith.addf %105, %106 : vector<8x32xf32>
    %108 = arith.truncf %107 : vector<8x32xf32> to vector<8x32xbf16>
    %c0_46 = arith.constant 0 : index
    %c0_47 = arith.constant 0 : index
    %c0_48 = arith.constant 0 : index
    %109 = vector.load %arg11[%c0_46, %c0_47, %c0_48] : memref<1x32x128xbf16, #tpu.memory_space<vmem>>, vector<1x32x128xbf16>
    %110 = vector.shape_cast %109 : vector<1x32x128xbf16> to vector<32x128xbf16>
    %cst_49 = arith.constant dense<0.000000e+00> : vector<8x128xf32>
    %111 = tpu.matmul %108, %110, %cst_49 {dimension_numbers = #tpu.dot_dimension_numbers<[1], [0], [0], [1], [0, 0, 1, 1], [], []>} : vector<8x32xbf16>, vector<32x128xbf16>, vector<8x128xf32> -> vector<8x128xf32>
    %c0_50 = arith.constant 0 : index
    %c0_51 = arith.constant 0 : index
    %c0_52 = arith.constant 0 : index
    %112 = vector.load %arg12[%c0_50, %c0_51, %c0_52] : memref<1x1x128xf32, #tpu.memory_space<vmem>>, vector<1x1x128xf32>
    %113 = vector.shape_cast %112 : vector<1x1x128xf32> to vector<1x128xf32>
    %114 = vector.broadcast %113 : vector<1x128xf32> to vector<8x128xf32>
    %115 = arith.addf %111, %114 : vector<8x128xf32>
    %cst_53 = arith.constant 1.702000e+00 : f32
    %116 = vector.broadcast %cst_53 : f32 to vector<8x128xf32>
    %117 = arith.mulf %116, %115 : vector<8x128xf32>
    %118 = arith.negf %117 : vector<8x128xf32>
    %119 = math.exp %118 : vector<8x128xf32>
    %cst_54 = arith.constant 1.000000e+00 : f32
    %120 = vector.broadcast %cst_54 : f32 to vector<8x128xf32>
    %121 = arith.addf %120, %119 : vector<8x128xf32>
    %122 = arith.divf %120, %121 : vector<8x128xf32>
    %123 = arith.mulf %115, %122 : vector<8x128xf32>
    %124 = arith.truncf %123 : vector<8x128xf32> to vector<8x128xbf16>
    %c0_55 = arith.constant 0 : index
    %c0_56 = arith.constant 0 : index
    %c0_57 = arith.constant 0 : index
    %125 = vector.load %arg13[%c0_55, %c0_56, %c0_57] : memref<1x128x32xbf16, #tpu.memory_space<vmem>>, vector<1x128x32xbf16>
    %126 = vector.shape_cast %125 : vector<1x128x32xbf16> to vector<128x32xbf16>
    %cst_58 = arith.constant dense<0.000000e+00> : vector<8x32xf32>
    %127 = tpu.matmul %124, %126, %cst_58 {dimension_numbers = #tpu.dot_dimension_numbers<[1], [0], [0], [1], [0, 0, 1, 1], [], []>} : vector<8x128xbf16>, vector<128x32xbf16>, vector<8x32xf32> -> vector<8x32xf32>
    %128 = arith.addf %85, %127 : vector<8x32xf32>
    %129 = vector.broadcast %11 : vector<1x32xf32> to vector<8x32xf32>
    %130 = arith.addf %128, %129 : vector<8x32xf32>
    %c0_59 = arith.constant 0 : index
    %c0_60 = arith.constant 0 : index
    %131 = vector.load %arg18[%c0_59, %c0_60] : memref<8x32xf32, #tpu.memory_space<vmem>>, vector<8x32xf32>
    tpu.vector_store %arg18[%c0_59, %c0_60], %130 {strides = array<i32>} : memref<8x32xf32, #tpu.memory_space<vmem>>, vector<8x32xf32>,
    %c1_i32 = arith.constant 1 : i32
    %132 = arith.cmpi eq, %arg1, %c1_i32 : i32
    %133 = arith.extui %132 : i1 to i32
    %c0_i32_61 = arith.constant 0 : i32
    %134 = arith.cmpi ne, %133, %c0_i32_61 : i32
    scf.if %134 {
      %c0_62 = arith.constant 0 : index
      %c0_63 = arith.constant 0 : index
      %135 = vector.load %arg15[%c0_62, %c0_63] : memref<2x32xf32, #tpu.memory_space<vmem>>, vector<2x32xf32>
      %c0_64 = arith.constant 0 : index
      %c0_65 = arith.constant 0 : index
      %136 = vector.load %arg18[%c0_64, %c0_65] : memref<8x32xf32, #tpu.memory_space<vmem>>, vector<8x32xf32>
      %137 = vector.extract_strided_slice %135 {offsets = [0, 0], sizes = [1, 32], strides = [1, 1]} : vector<2x32xf32> to vector<1x32xf32>
      %138 = vector.extract_strided_slice %135 {offsets = [1, 0], sizes = [1, 32], strides = [1, 1]} : vector<2x32xf32> to vector<1x32xf32>
      %cst_66 = arith.constant dense<0.000000e+00> : vector<8xf32>
      %139 = vector.multi_reduction <add>, %136, %cst_66 [1] : vector<8x32xf32> to vector<8xf32>
      %140 = vector.shape_cast %139 : vector<8xf32> to vector<8x1xf32>
      %cst_67 = arith.constant 3.200000e+01 : f32
      %141 = vector.broadcast %cst_67 : f32 to vector<8x1xf32>
      %142 = arith.divf %140, %141 : vector<8x1xf32>
      %143 = vector.broadcast %142 : vector<8x1xf32> to vector<8x32xf32>
      %144 = arith.subf %136, %143 : vector<8x32xf32>
      %145 = arith.mulf %144, %144 : vector<8x32xf32>
      %cst_68 = arith.constant dense<0.000000e+00> : vector<8xf32>
      %146 = vector.multi_reduction <add>, %145, %cst_68 [1] : vector<8x32xf32> to vector<8xf32>
      %147 = vector.shape_cast %146 : vector<8xf32> to vector<8x1xf32>
      %cst_69 = arith.constant 3.200000e+01 : f32
      %148 = vector.broadcast %cst_69 : f32 to vector<8x1xf32>
      %149 = arith.divf %147, %148 : vector<8x1xf32>
      %150 = vector.broadcast %142 : vector<8x1xf32> to vector<8x32xf32>
      %151 = arith.subf %136, %150 : vector<8x32xf32>
      %cst_70 = arith.constant 9.99999974E-6 : f32
      %152 = vector.broadcast %cst_70 : f32 to vector<8x1xf32>
      %153 = arith.addf %149, %152 : vector<8x1xf32>
      %154 = math.rsqrt %153 : vector<8x1xf32>
      %155 = vector.broadcast %154 : vector<8x1xf32> to vector<8x32xf32>
      %156 = arith.mulf %151, %155 : vector<8x32xf32>
      %157 = vector.broadcast %137 : vector<1x32xf32> to vector<8x32xf32>
      %158 = arith.mulf %156, %157 : vector<8x32xf32>
      %159 = vector.broadcast %138 : vector<1x32xf32> to vector<8x32xf32>
      %160 = arith.addf %158, %159 : vector<8x32xf32>
      %c0_71 = arith.constant 0 : index
      %c0_72 = arith.constant 0 : index
      %161 = vector.load %arg18[%c0_71, %c0_72] : memref<8x32xf32, #tpu.memory_space<vmem>>, vector<8x32xf32>
      tpu.vector_store %arg18[%c0_71, %c0_72], %160 {strides = array<i32>} : memref<8x32xf32, #tpu.memory_space<vmem>>, vector<8x32xf32>,
      %162 = arith.index_cast %arg0 : i32 to index
      %163 = memref.load %arg2[%162] : memref<2xi32, #tpu.memory_space<smem>>
      %164 = arith.index_cast %163 : i32 to index
      %c0_73 = arith.constant 0 : index
      %165 = vector.load %arg18[%164, %c0_73] : memref<8x32xf32, #tpu.memory_space<vmem>>, vector<1x32xf32>
      %166 = arith.truncf %165 : vector<1x32xf32> to vector<1x32xbf16>
      %c0_74 = arith.constant 0 : index
      %c0_75 = arith.constant 0 : index
      %167 = vector.load %arg16[%c0_74, %c0_75] : memref<32x128xbf16, #tpu.memory_space<vmem>>, vector<32x128xbf16>
      %cst_76 = arith.constant dense<0.000000e+00> : vector<1x128xf32>
      %168 = tpu.matmul %166, %167, %cst_76 {dimension_numbers = #tpu.dot_dimension_numbers<[1], [0], [0], [1], [0, 0, 1, 1], [], []>} : vector<1x32xbf16>, vector<32x128xbf16>, vector<1x128xf32> -> vector<1x128xf32>
      %169 = vector.shape_cast %168 : vector<1x128xf32> to vector<1x1x128xf32>
      %c0_77 = arith.constant 0 : index
      %c0_78 = arith.constant 0 : index
      %c0_79 = arith.constant 0 : index
      %170 = vector.load %arg17[%c0_77, %c0_78, %c0_79] : memref<1x1x128xf32, #tpu.memory_space<vmem>>, vector<1x1x128xf32>
      tpu.vector_store %arg17[%c0_77, %c0_78, %c0_79], %169 {strides = array<i32>} : memref<1x1x128xf32, #tpu.memory_space<vmem>>, vector<1x1x128xf32>,
    } else {
    }
    return
  }
  func.func @transform_0(%arg0: i32, %arg1: i32, %arg2: memref<2xi32, #tpu.memory_space<smem>>) -> (i32, i32, i32) {
    %c0_i32 = arith.constant 0 : i32
    %c0_i32_0 = arith.constant 0 : i32
    %c0_i32_1 = arith.constant 0 : i32
    return %arg0, %c0_i32, %c0_i32_0 : i32, i32, i32
  }
  func.func @transform_1(%arg0: i32, %arg1: i32, %arg2: memref<2xi32, #tpu.memory_space<smem>>) -> (i32, i32) {
    %c0_i32 = arith.constant 0 : i32
    %c0_i32_0 = arith.constant 0 : i32
    %c0_i32_1 = arith.constant 0 : i32
    return %c0_i32, %c0_i32_0 : i32, i32
  }
  func.func @transform_2(%arg0: i32, %arg1: i32, %arg2: memref<2xi32, #tpu.memory_space<smem>>) -> (i32, i32) {
    %c0_i32 = arith.constant 0 : i32
    %c0_i32_0 = arith.constant 0 : i32
    %c0_i32_1 = arith.constant 0 : i32
    return %c0_i32, %c0_i32_0 : i32, i32
  }
  func.func @transform_3(%arg0: i32, %arg1: i32, %arg2: memref<2xi32, #tpu.memory_space<smem>>) -> (i32, i32, i32, i32) {
    %c0_i32 = arith.constant 0 : i32
    %c0_i32_0 = arith.constant 0 : i32
    %c0_i32_1 = arith.constant 0 : i32
    %c0_i32_2 = arith.constant 0 : i32
    return %arg1, %c0_i32, %c0_i32_0, %c0_i32_1 : i32, i32, i32, i32
  }
  func.func @transform_4(%arg0: i32, %arg1: i32, %arg2: memref<2xi32, #tpu.memory_space<smem>>) -> (i32, i32, i32, i32) {
    %c0_i32 = arith.constant 0 : i32
    %c0_i32_0 = arith.constant 0 : i32
    %c0_i32_1 = arith.constant 0 : i32
    %c0_i32_2 = arith.constant 0 : i32
    return %arg1, %c0_i32, %c0_i32_0, %c0_i32_1 : i32, i32, i32, i32
  }
  func.func @transform_5(%arg0: i32, %arg1: i32, %arg2: memref<2xi32, #tpu.memory_space<smem>>) -> (i32, i32, i32, i32) {
    %c0_i32 = arith.constant 0 : i32
    %c0_i32_0 = arith.constant 0 : i32
    %c0_i32_1 = arith.constant 0 : i32
    %c0_i32_2 = arith.constant 0 : i32
    return %arg1, %c0_i32, %c0_i32_0, %c0_i32_1 : i32, i32, i32, i32
  }
  func.func @transform_6(%arg0: i32, %arg1: i32, %arg2: memref<2xi32, #tpu.memory_space<smem>>) -> (i32, i32, i32, i32) {
    %c0_i32 = arith.constant 0 : i32
    %c0_i32_0 = arith.constant 0 : i32
    %c0_i32_1 = arith.constant 0 : i32
    %c0_i32_2 = arith.constant 0 : i32
    return %arg1, %c0_i32, %c0_i32_0, %c0_i32_1 : i32, i32, i32, i32
  }
  func.func @transform_7(%arg0: i32, %arg1: i32, %arg2: memref<2xi32, #tpu.memory_space<smem>>) -> (i32, i32, i32, i32) {
    %c0_i32 = arith.constant 0 : i32
    %c0_i32_0 = arith.constant 0 : i32
    %c0_i32_1 = arith.constant 0 : i32
    %c0_i32_2 = arith.constant 0 : i32
    return %arg1, %c0_i32, %c0_i32_0, %c0_i32_1 : i32, i32, i32, i32
  }
  func.func @transform_8(%arg0: i32, %arg1: i32, %arg2: memref<2xi32, #tpu.memory_space<smem>>) -> (i32, i32, i32) {
    %c0_i32 = arith.constant 0 : i32
    %c0_i32_0 = arith.constant 0 : i32
    %c0_i32_1 = arith.constant 0 : i32
    return %arg1, %c0_i32, %c0_i32_0 : i32, i32, i32
  }
  func.func @transform_9(%arg0: i32, %arg1: i32, %arg2: memref<2xi32, #tpu.memory_space<smem>>) -> (i32, i32, i32) {
    %c0_i32 = arith.constant 0 : i32
    %c0_i32_0 = arith.constant 0 : i32
    %c0_i32_1 = arith.constant 0 : i32
    return %arg1, %c0_i32, %c0_i32_0 : i32, i32, i32
  }
  func.func @transform_10(%arg0: i32, %arg1: i32, %arg2: memref<2xi32, #tpu.memory_space<smem>>) -> (i32, i32, i32) {
    %c0_i32 = arith.constant 0 : i32
    %c0_i32_0 = arith.constant 0 : i32
    %c0_i32_1 = arith.constant 0 : i32
    return %arg1, %c0_i32, %c0_i32_0 : i32, i32, i32
  }
  func.func @transform_11(%arg0: i32, %arg1: i32, %arg2: memref<2xi32, #tpu.memory_space<smem>>) -> (i32, i32, i32) {
    %c0_i32 = arith.constant 0 : i32
    %c0_i32_0 = arith.constant 0 : i32
    %c0_i32_1 = arith.constant 0 : i32
    return %arg1, %c0_i32, %c0_i32_0 : i32, i32, i32
  }
  func.func @transform_12(%arg0: i32, %arg1: i32, %arg2: memref<2xi32, #tpu.memory_space<smem>>) -> (i32, i32) {
    %c0_i32 = arith.constant 0 : i32
    %c0_i32_0 = arith.constant 0 : i32
    %c0_i32_1 = arith.constant 0 : i32
    return %c0_i32, %c0_i32_0 : i32, i32
  }
  func.func @transform_13(%arg0: i32, %arg1: i32, %arg2: memref<2xi32, #tpu.memory_space<smem>>) -> (i32, i32) {
    %c0_i32 = arith.constant 0 : i32
    %c0_i32_0 = arith.constant 0 : i32
    %c0_i32_1 = arith.constant 0 : i32
    return %c0_i32, %c0_i32_0 : i32, i32
  }
  func.func @transform_14(%arg0: i32, %arg1: i32, %arg2: memref<2xi32, #tpu.memory_space<smem>>) -> (i32, i32, i32) {
    %c0_i32 = arith.constant 0 : i32
    %c0_i32_0 = arith.constant 0 : i32
    %c0_i32_1 = arith.constant 0 : i32
    return %arg0, %c0_i32, %c0_i32_0 : i32, i32, i32
  }
}

</mosaic_0001>

<llo_original>
// kernel: squeeze.0
$region0: #{squeeze.0}
  %s0 = inlined_call_operand.vmem [shape: f32[2,96], index: 0, kind: input, shape index: {}]
  %s1 = inlined_call_operand.vmem [shape: f32[2,12,1,8], index: 1, kind: output, shape index: {}]
  $region1: #{squeeze.0} parent=0
    #allocation0 [shape = 'u8[98304]{0}', space=vmem, size = 0x18000, scoped, tag = 'scoped mem for output reshape']
    #allocation1 [shape = 'u8[4096]{0}', space=vmem, size = 0x1000, scoped, tag = 'scoped mem for input reshape']
    %s3 = ssub.s32 4, 1
    %v4 = vld [vmem:[%s0] sm:%s3]
    %5 = vst [vmem:[#allocation1] sm:%s3] %v4
    %v6 = vld [vmem:[#allocation1] sm:$0x3]
    %vm7 = vcmask 64512
    %8 = vst.msk [vmem:[#allocation0] sm:$0x1] %vm7, %v6
    %s9 = scalar_lea.vmem [#allocation0], 95
    %10 = vst.msk [vmem:[%s9] sm:$0x2] %vm7, %v6
    %v11 = vld [vmem:[#allocation1] sm:$0x3]
    %12 = vrot.lane.b32.xlu0 %v11, 120
    %v13 = vpop.permute.xlu0 %12
    %vm14 = vcmask 64512
    %s15 = scalar_lea.vmem [#allocation0], 8
    %16 = vst.msk [vmem:[%s15] sm:$0x1] %vm14, %v13
    %s17 = scalar_lea.vmem [#allocation0], 103
    %18 = vst.msk [vmem:[%s17] sm:$0x2] %vm14, %v13
    %v19 = vld [vmem:[#allocation1] sm:$0x3]
    %20 = vrot.lane.b32.xlu0 %v19, 112
    %v21 = vpop.permute.xlu0 %20
    %vm22 = vcmask 64512
    %s23 = scalar_lea.vmem [#allocation0], 16
    %24 = vst.msk [vmem:[%s23] sm:$0x1] %vm22, %v21
    %s25 = scalar_lea.vmem [#allocation0], 111
    %26 = vst.msk [vmem:[%s25] sm:$0x2] %vm22, %v21
    %v27 = vld [vmem:[#allocation1] sm:$0x3]
    %28 = vrot.lane.b32.xlu0 %v27, 104
    %v29 = vpop.permute.xlu0 %28
    %vm30 = vcmask 64512
    %s31 = scalar_lea.vmem [#allocation0], 24
    %32 = vst.msk [vmem:[%s31] sm:$0x1] %vm30, %v29
    %s33 = scalar_lea.vmem [#allocation0], 119
    %34 = vst.msk [vmem:[%s33] sm:$0x2] %vm30, %v29
    %v35 = vld [vmem:[#allocation1] sm:$0x3]
    %36 = vrot.lane.b32.xlu0 %v35, 96
    %v37 = vpop.permute.xlu0 %36
    %vm38 = vcmask 64512
    %s39 = scalar_lea.vmem [#allocation0], 32
    %40 = vst.msk [vmem:[%s39] sm:$0x1] %vm38, %v37
    %s41 = scalar_lea.vmem [#allocation0], 127
    %42 = vst.msk [vmem:[%s41] sm:$0x2] %vm38, %v37
    %v43 = vld [vmem:[#allocation1] sm:$0x3]
    %44 = vrot.lane.b32.xlu0 %v43, 88
    %v45 = vpop.permute.xlu0 %44
    %vm46 = vcmask 64512
    %s47 = scalar_lea.vmem [#allocation0], 40
    %48 = vst.msk [vmem:[%s47] sm:$0x1] %vm46, %v45
    %s49 = scalar_lea.vmem [#allocation0], 135
    %50 = vst.msk [vmem:[%s49] sm:$0x2] %vm46, %v45
    %v51 = vld [vmem:[#allocation1] sm:$0x3]
    %52 = vrot.lane.b32.xlu0 %v51, 80
    %v53 = vpop.permute.xlu0 %52
    %vm54 = vcmask 64512
    %s55 = scalar_lea.vmem [#allocation0], 48
    %56 = vst.msk [vmem:[%s55] sm:$0x1] %vm54, %v53
    %s57 = scalar_lea.vmem [#allocation0], 143
    %58 = vst.msk [vmem:[%s57] sm:$0x2] %vm54, %v53
    %v59 = vld [vmem:[#allocation1] sm:$0x3]
    %60 = vrot.lane.b32.xlu0 %v59, 72
    %v61 = vpop.permute.xlu0 %60
    %vm62 = vcmask 64512
    %s63 = scalar_lea.vmem [#allocation0], 56
    %64 = vst.msk [vmem:[%s63] sm:$0x1] %vm62, %v61
    %s65 = scalar_lea.vmem [#allocation0], 151
    %66 = vst.msk [vmem:[%s65] sm:$0x2] %vm62, %v61
    %v67 = vld [vmem:[#allocation1] sm:$0x3]
    %68 = vrot.lane.b32.xlu0 %v67, 64
    %v69 = vpop.permute.xlu0 %68
    %vm70 = vcmask 64512
    %s71 = scalar_lea.vmem [#allocation0], 64
    %72 = vst.msk [vmem:[%s71] sm:$0x1] %vm70, %v69
    %s73 = scalar_lea.vmem [#allocation0], 159
    %74 = vst.msk [vmem:[%s73] sm:$0x2] %vm70, %v69
    %v75 = vld [vmem:[#allocation1] sm:$0x3]
    %76 = vrot.lane.b32.xlu0 %v75, 56
    %v77 = vpop.permute.xlu0 %76
    %vm78 = vcmask 64512
    %s79 = scalar_lea.vmem [#allocation0], 72
    %80 = vst.msk [vmem:[%s79] sm:$0x1] %vm78, %v77
    %s81 = scalar_lea.vmem [#allocation0], 167
    %82 = vst.msk [vmem:[%s81] sm:$0x2] %vm78, %v77
    %v83 = vld [vmem:[#allocation1] sm:$0x3]
    %84 = vrot.lane.b32.xlu0 %v83, 48
    %v85 = vpop.permute.xlu0 %84
    %vm86 = vcmask 64512
    %s87 = scalar_lea.vmem [#allocation0], 80
    %88 = vst.msk [vmem:[%s87] sm:$0x1] %vm86, %v85
    %s89 = scalar_lea.vmem [#allocation0], 175
    %90 = vst.msk [vmem:[%s89] sm:$0x2] %vm86, %v85
    %v91 = vld [vmem:[#allocation1] sm:$0x3]
    %92 = vrot.lane.b32.xlu0 %v91, 40
    %v93 = vpop.permute.xlu0 %92
    %vm94 = vcmask 64512
    %s95 = scalar_lea.vmem [#allocation0], 88
    %96 = vst.msk [vmem:[%s95] sm:$0x1] %vm94, %v93
    %s97 = scalar_lea.vmem [#allocation0], 183
    %98 = vst.msk [vmem:[%s97] sm:$0x2] %vm94, %v93
    %s100 = ssub.s32 2, 1
    %v101 = vld [vmem:[#allocation0] sm:%s100]
    %s103 = ssub.s32 2, 1
    %104 = vst [vmem:[%s1] sm:%s103] %v101
    %s105 = scalar_lea.vmem [#allocation0], 8
    %v106 = vld [vmem:[%s105] sm:%s100]
    %s108 = ssub.s32 2, 1
    %s109 = scalar_lea.vmem %s1, 1
    %110 = vst [vmem:[%s109] sm:%s108] %v106
    %s111 = scalar_lea.vmem [#allocation0], 16
    %v112 = vld [vmem:[%s111] sm:%s100]
    %s114 = ssub.s32 2, 1
    %s115 = scalar_lea.vmem %s1, 2
    %116 = vst [vmem:[%s115] sm:%s114] %v112
    %s117 = scalar_lea.vmem [#allocation0], 24
    %v118 = vld [vmem:[%s117] sm:%s100]
    %s120 = ssub.s32 2, 1
    %s121 = scalar_lea.vmem %s1, 3
    %122 = vst [vmem:[%s121] sm:%s120] %v118
    %s123 = scalar_lea.vmem [#allocation0], 32
    %v124 = vld [vmem:[%s123] sm:%s100]
    %s126 = ssub.s32 2, 1
    %s127 = scalar_lea.vmem %s1, 4
    %128 = vst [vmem:[%s127] sm:%s126] %v124
    %s129 = scalar_lea.vmem [#allocation0], 40
    %v130 = vld [vmem:[%s129] sm:%s100]
    %s132 = ssub.s32 2, 1
    %s133 = scalar_lea.vmem %s1, 5
    %134 = vst [vmem:[%s133] sm:%s132] %v130
    %s135 = scalar_lea.vmem [#allocation0], 48
    %v136 = vld [vmem:[%s135] sm:%s100]
    %s138 = ssub.s32 2, 1
    %s139 = scalar_lea.vmem %s1, 6
    %140 = vst [vmem:[%s139] sm:%s138] %v136
    %s141 = scalar_lea.vmem [#allocation0], 56
    %v142 = vld [vmem:[%s141] sm:%s100]
    %s144 = ssub.s32 2, 1
    %s145 = scalar_lea.vmem %s1, 7
    %146 = vst [vmem:[%s145] sm:%s144] %v142
    %s147 = scalar_lea.vmem [#allocation0], 64
    %v148 = vld [vmem:[%s147] sm:%s100]
    %s150 = ssub.s32 2, 1
    %s151 = scalar_lea.vmem %s1, 8
    %152 = vst [vmem:[%s151] sm:%s150] %v148
    %s153 = scalar_lea.vmem [#allocation0], 72
    %v154 = vld [vmem:[%s153] sm:%s100]
    %s156 = ssub.s32 2, 1
    %s157 = scalar_lea.vmem %s1, 9
    %158 = vst [vmem:[%s157] sm:%s156] %v154
    %s159 = scalar_lea.vmem [#allocation0], 80
    %v160 = vld [vmem:[%s159] sm:%s100]
    %s162 = ssub.s32 2, 1
    %s163 = scalar_lea.vmem %s1, 10
    %164 = vst [vmem:[%s163] sm:%s162] %v160
    %s165 = scalar_lea.vmem [#allocation0], 88
    %v166 = vld [vmem:[%s165] sm:%s100]
    %s168 = ssub.s32 2, 1
    %s169 = scalar_lea.vmem %s1, 11
    %170 = vst [vmem:[%s169] sm:%s168] %v166
    %s171 = scalar_lea.vmem [#allocation0], 96
    %v172 = vld [vmem:[%s171] sm:%s100]
    %s174 = ssub.s32 2, 1
    %s175 = scalar_lea.vmem %s1, 12
    %176 = vst [vmem:[%s175] sm:%s174] %v172
    %s177 = scalar_lea.vmem [#allocation0], 104
    %v178 = vld [vmem:[%s177] sm:%s100]
    %s180 = ssub.s32 2, 1
    %s181 = scalar_lea.vmem %s1, 13
    %182 = vst [vmem:[%s181] sm:%s180] %v178
    %s183 = scalar_lea.vmem [#allocation0], 112
    %v184 = vld [vmem:[%s183] sm:%s100]
    %s186 = ssub.s32 2, 1
    %s187 = scalar_lea.vmem %s1, 14
    %188 = vst [vmem:[%s187] sm:%s186] %v184
    %s189 = scalar_lea.vmem [#allocation0], 120
    %v190 = vld [vmem:[%s189] sm:%s100]
    %s192 = ssub.s32 2, 1
    %s193 = scalar_lea.vmem %s1, 15
    %194 = vst [vmem:[%s193] sm:%s192] %v190
    %s195 = scalar_lea.vmem [#allocation0], 128
    %v196 = vld [vmem:[%s195] sm:%s100]
    %s198 = ssub.s32 2, 1
    %s199 = scalar_lea.vmem %s1, 16
    %200 = vst [vmem:[%s199] sm:%s198] %v196
    %s201 = scalar_lea.vmem [#allocation0], 136
    %v202 = vld [vmem:[%s201] sm:%s100]
    %s204 = ssub.s32 2, 1
    %s205 = scalar_lea.vmem %s1, 17
    %206 = vst [vmem:[%s205] sm:%s204] %v202
    %s207 = scalar_lea.vmem [#allocation0], 144
    %v208 = vld [vmem:[%s207] sm:%s100]
    %s210 = ssub.s32 2, 1
    %s211 = scalar_lea.vmem %s1, 18
    %212 = vst [vmem:[%s211] sm:%s210] %v208
    %s213 = scalar_lea.vmem [#allocation0], 152
    %v214 = vld [vmem:[%s213] sm:%s100]
    %s216 = ssub.s32 2, 1
    %s217 = scalar_lea.vmem %s1, 19
    %218 = vst [vmem:[%s217] sm:%s216] %v214
    %s219 = scalar_lea.vmem [#allocation0], 160
    %v220 = vld [vmem:[%s219] sm:%s100]
    %s222 = ssub.s32 2, 1
    %s223 = scalar_lea.vmem %s1, 20
    %224 = vst [vmem:[%s223] sm:%s222] %v220
    %s225 = scalar_lea.vmem [#allocation0], 168
    %v226 = vld [vmem:[%s225] sm:%s100]
    %s228 = ssub.s32 2, 1
    %s229 = scalar_lea.vmem %s1, 21
    %230 = vst [vmem:[%s229] sm:%s228] %v226
    %s231 = scalar_lea.vmem [#allocation0], 176
    %v232 = vld [vmem:[%s231] sm:%s100]
    %s234 = ssub.s32 2, 1
    %s235 = scalar_lea.vmem %s1, 22
    %236 = vst [vmem:[%s235] sm:%s234] %v232
    %s237 = scalar_lea.vmem [#allocation0], 184
    %v238 = vld [vmem:[%s237] sm:%s100]
    %s240 = ssub.s32 2, 1
    %s241 = scalar_lea.vmem %s1, 23
    %242 = vst [vmem:[%s241] sm:%s240] %v238

// kernel: text_encoder.1
$region0: #{text_encoder.1}
  #allocation0 [shape = 'u32[]', space=smem, size = 0x4, offset = 0x4, fixed_abs, tag = 'smem constant byte address 0x4 - core index']
  #allocation1 [shape = 'u32[72,128]{1,0:T(1,128)}', space=vmem, size = 0x9000, scoped, tag = 'internal scratch']
  #allocation2 [shape = 'f32[8,32]{1,0:T(8,128)}', space=vmem, size = 0x1000, scoped, tag = 'scratch operand']
  #allocation3 [shape = 's32[1]{0}', space=sflag, size = 0x4, scoped, tag = 'scoped memory for text_encoder.1']
  #allocation4 [shape = 'u8[512]{0}', space=smem, size = 0x200, scoped, tag = 'prefetched SMEM operand 0']
  %s0 = inlined_call_operand.vmem [shape: s32[2], index: 0, kind: input, shape index: {}]
  %s1 = inlined_call_operand.vmem [shape: f32[2,8,32], index: 1, kind: input, shape index: {}]
  %s2 = inlined_call_operand.vmem [shape: f32[8,32], index: 2, kind: input, shape index: {}]
  %s3 = inlined_call_operand.vmem [shape: f32[8,8], index: 3, kind: input, shape index: {}]
  %s4 = inlined_call_operand.vmem [shape: bf16[2,4,32,8], index: 4, kind: input, shape index: {}]
  %s5 = inlined_call_operand.vmem [shape: bf16[2,4,32,8], index: 5, kind: input, shape index: {}]
  %s6 = inlined_call_operand.vmem [shape: bf16[2,4,32,8], index: 6, kind: input, shape index: {}]
  %s7 = inlined_call_operand.vmem [shape: f32[2,12,1,8], index: 7, kind: input, shape index: {}]
  %s8 = inlined_call_operand.vmem [shape: bf16[2,4,8,32], index: 8, kind: input, shape index: {}]
  %s9 = inlined_call_operand.vmem [shape: bf16[2,32,128], index: 9, kind: input, shape index: {}]
  %s10 = inlined_call_operand.vmem [shape: f32[2,1,128], index: 10, kind: input, shape index: {}]
  %s11 = inlined_call_operand.vmem [shape: bf16[2,128,32], index: 11, kind: input, shape index: {}]
  %s12 = inlined_call_operand.vmem [shape: f32[2,6,32], index: 12, kind: input, shape index: {}]
  %s13 = inlined_call_operand.vmem [shape: f32[2,32], index: 13, kind: input, shape index: {}]
  %s14 = inlined_call_operand.vmem [shape: bf16[32,128], index: 14, kind: input, shape index: {}]
  %s15 = inlined_call_operand.hbm [shape: f32[2,1,128], index: 15, kind: output, shape index: {}]
  %s16 = sld [smem:[#allocation0]]
  $region97: #{text_encoder.1} parent=0
    _
  %s18 = ssub.s32 1, %s16
  %s19 = scalar_select 0, %s18, %s16
  %s21 = sshll.u32 %s0, 4
  %s22 = int_to_ptr.vmem [resolvable:$true] %s21
  %24 = dma.vmem_to_smem %s22, 16, [#allocation4], [#allocation3]
  %26 = dma.done [#allocation3], 16
  %27 = sfence
  $region1: #{text_encoder.1} parent=0
    #allocation5 [shape = 'u8[1024]{0}', space=vmem, size = 0x400, scoped, tag = 'output window, operand 0']
    #allocation6 [shape = 's32[2]{0}', space=sflag, size = 0x8, scoped, tag = 'scoped memory for text_encoder.1']
    %28 = vsyncpa [#allocation6], 0
    %s29 = scalar_lea.sflag [#allocation6], 1
    %30 = vsyncpa %s29, 0
    loop: start=0, step=1, limit=6
    $region2: #{text_encoder.1} parent=1 // loop_pre_header
      _
    $region3: #{text_encoder.1} parent=1 // loop_header
      %s32 = sphi 0, %s36
      %p33 = scmp.ge.s32.totalorder %s32, 6
      %s39 = sphi 0, %s51
      %s40 = sphi 0, %s47
      %s41 = sphi 0, %s39
      %s42 = sphi 0, %s40
      %s43 = sphi 0, %s41
      %s44 = sphi 0, %s42
      %s54 = sphi 0, %s56
      %s57 = sphi 0, %s54
      %s58 = sphi 0, %s57
      %s74 = sphi 0, %s58
      %s78 = sphi 0, %s78
      %s80 = sphi 0, %s78
      %s81 = sphi 0, %s80
      %s95 = sphi 0, %s81
      %s99 = sphi 0, %s99
      %s101 = sphi 0, %s99
      %s102 = sphi 0, %s101
      %s116 = sphi 0, %s102
      %s122 = sphi 0, %s124
      %s125 = sphi 0, %s122
      %s126 = sphi 0, %s125
      %s142 = sphi 0, %s126
      %s148 = sphi 0, %s150
      %s151 = sphi 0, %s148
      %s152 = sphi 0, %s151
      %s168 = sphi 0, %s152
      %s174 = sphi 0, %s176
      %s177 = sphi 0, %s174
      %s178 = sphi 0, %s177
      %s194 = sphi 0, %s178
      %s200 = sphi 0, %s202
      %s203 = sphi 0, %s200
      %s204 = sphi 0, %s203
      %s220 = sphi 0, %s204
      %s226 = sphi 0, %s228
      %s229 = sphi 0, %s226
      %s230 = sphi 0, %s229
      %s246 = sphi 0, %s230
      %s252 = sphi 0, %s254
      %s255 = sphi 0, %s252
      %s256 = sphi 0, %s255
      %s272 = sphi 0, %s256
      %s278 = sphi 0, %s280
      %s281 = sphi 0, %s278
      %s282 = sphi 0, %s281
      %s298 = sphi 0, %s282
      %s304 = sphi 0, %s306
      %s307 = sphi 0, %s304
      %s308 = sphi 0, %s307
      %s324 = sphi 0, %s308
      %s330 = sphi 0, %s332
      %s333 = sphi 0, %s330
      %s334 = sphi 0, %s333
      %s350 = sphi 0, %s334
      %s354 = sphi 0, %s354
      %s356 = sphi 0, %s354
      %s357 = sphi 0, %s356
      %s371 = sphi 0, %s357
      %s375 = sphi 0, %s375
      %s377 = sphi 0, %s375
      %s378 = sphi 0, %s377
      %s392 = sphi 0, %s378
      %s398 = sphi 0, %s400
      %s401 = sphi 0, %s398
      %s402 = sphi 0, %s401
      %s418 = sphi 0, %s402
    $region4: #{text_encoder.1} parent=1 // loop_header_branch
      %35 = sbr.rel (%p33) target = $region8
    $region5: #{text_encoder.1} parent=1 // loop_body
      %s37 = ssub.s32 %s32, 1
      %s38 = ssub.s32 %s32, 2
      %s45 = sadd.s32 1, %s40
      %p46 = scmp.ge.s32.totalorder %s45, 2
      %s47 = scalar_select %p46, 0, %s45
      %s48 = sadd.s32 1, %s39
      %s49 = scalar_select %p46, %s48, %s39
      %p50 = scmp.ge.s32.totalorder %s49, 2
      %s51 = scalar_select %p50, 0, %s49
      %s52 = ssub.s32 %s39, %s51
      %p53 = scmp.eq.s32.totalorder %s52, 0
      %s55 = sadd.s32 %s54, 1
      %s56 = scalar_select %p53, %s54, %s55
      %p59 = pneg %p53
      %p60 = scmp.eq.s32.totalorder %s32, 3
      %p61 = por %p59, %p60
      %p62 = scmp.ne.s32.totalorder %s54, %s57
      %p63 = scmp.eq.s32.totalorder %s32, 0
      %p64 = por %p62, %p63
      %p65 = scmp.ne.s32.totalorder %s54, %s57
      %p66 = scmp.eq.s32.totalorder %s37, 3
      %p67 = por %p65, %p66
      %p68 = scmp.ne.s32.totalorder %s57, %s58
      %p69 = scmp.eq.s32.totalorder %s37, 0
      %p70 = por %p68, %p69
      %p71 = scmp.ne.s32.totalorder %s57, %s58
      %p72 = scmp.eq.s32.totalorder %s38, 3
      %p73 = por %p71, %p72
      %p75 = scmp.ne.s32.totalorder %s58, %s74
      %p76 = scmp.eq.s32.totalorder %s38, 0
      %p77 = por %p75, %p76
      %s79 = sadd.s32 %s78, 1
      %p82 = scmp.eq.s32.totalorder %s32, 3
      %p83 = scmp.ne.s32.totalorder %s78, %s80
      %p84 = scmp.eq.s32.totalorder %s32, 0
      %p85 = por %p83, %p84
      %p86 = scmp.ne.s32.totalorder %s78, %s80
      %p87 = scmp.eq.s32.totalorder %s37, 3
      %p88 = por %p86, %p87
      %p89 = scmp.ne.s32.totalorder %s80, %s81
      %p90 = scmp.eq.s32.totalorder %s37, 0
      %p91 = por %p89, %p90
      %p92 = scmp.ne.s32.totalorder %s80, %s81
      %p93 = scmp.eq.s32.totalorder %s38, 3
      %p94 = por %p92, %p93
      %p96 = scmp.ne.s32.totalorder %s81, %s95
      %p97 = scmp.eq.s32.totalorder %s38, 0
      %p98 = por %p96, %p97
      %s100 = sadd.s32 %s99, 1
      %p103 = scmp.eq.s32.totalorder %s32, 3
      %p104 = scmp.ne.s32.totalorder %s99, %s101
      %p105 = scmp.eq.s32.totalorder %s32, 0
      %p106 = por %p104, %p105
      %p107 = scmp.ne.s32.totalorder %s99, %s101
      %p108 = scmp.eq.s32.totalorder %s37, 3
      %p109 = por %p107, %p108
      %p110 = scmp.ne.s32.totalorder %s101, %s102
      %p111 = scmp.eq.s32.totalorder %s37, 0
      %p112 = por %p110, %p111
      %p113 = scmp.ne.s32.totalorder %s101, %s102
      %p114 = scmp.eq.s32.totalorder %s38, 3
      %p115 = por %p113, %p114
      %p117 = scmp.ne.s32.totalorder %s102, %s116
      %p118 = scmp.eq.s32.totalorder %s38, 0
      %p119 = por %p117, %p118
      %s120 = ssub.s32 %s40, %s47
      %p121 = scmp.eq.s32.totalorder %s120, 0
      %s123 = sadd.s32 %s122, 1
      %s124 = scalar_select %p121, %s122, %s123
      %p127 = pneg %p121
      %p128 = scmp.eq.s32.totalorder %s32, 3
      %p129 = por %p127, %p128
      %p130 = scmp.ne.s32.totalorder %s122, %s125
      %p131 = scmp.eq.s32.totalorder %s32, 0
      %p132 = por %p130, %p131
      %p133 = scmp.ne.s32.totalorder %s122, %s125
      %p134 = scmp.eq.s32.totalorder %s37, 3
      %p135 = por %p133, %p134
      %p136 = scmp.ne.s32.totalorder %s125, %s126
      %p137 = scmp.eq.s32.totalorder %s37, 0
      %p138 = por %p136, %p137
      %p139 = scmp.ne.s32.totalorder %s125, %s126
      %p140 = scmp.eq.s32.totalorder %s38, 3
      %p141 = por %p139, %p140
      %p143 = scmp.ne.s32.totalorder %s126, %s142
      %p144 = scmp.eq.s32.totalorder %s38, 0
      %p145 = por %p143, %p144
      %s146 = ssub.s32 %s40, %s47
      %p147 = scmp.eq.s32.totalorder %s146, 0
      %s149 = sadd.s32 %s148, 1
      %s150 = scalar_select %p147, %s148, %s149
      %p153 = pneg %p147
      %p154 = scmp.eq.s32.totalorder %s32, 3
      %p155 = por %p153, %p154
      %p156 = scmp.ne.s32.totalorder %s148, %s151
      %p157 = scmp.eq.s32.totalorder %s32, 0
      %p158 = por %p156, %p157
      %p159 = scmp.ne.s32.totalorder %s148, %s151
      %p160 = scmp.eq.s32.totalorder %s37, 3
      %p161 = por %p159, %p160
      %p162 = scmp.ne.s32.totalorder %s151, %s152
      %p163 = scmp.eq.s32.totalorder %s37, 0
      %p164 = por %p162, %p163
      %p165 = scmp.ne.s32.totalorder %s151, %s152
      %p166 = scmp.eq.s32.totalorder %s38, 3
      %p167 = por %p165, %p166
      %p169 = scmp.ne.s32.totalorder %s152, %s168
      %p170 = scmp.eq.s32.totalorder %s38, 0
      %p171 = por %p169, %p170
      %s172 = ssub.s32 %s40, %s47
      %p173 = scmp.eq.s32.totalorder %s172, 0
      %s175 = sadd.s32 %s174, 1
      %s176 = scalar_select %p173, %s174, %s175
      %p179 = pneg %p173
      %p180 = scmp.eq.s32.totalorder %s32, 3
      %p181 = por %p179, %p180
      %p182 = scmp.ne.s32.totalorder %s174, %s177
      %p183 = scmp.eq.s32.totalorder %s32, 0
      %p184 = por %p182, %p183
      %p185 = scmp.ne.s32.totalorder %s174, %s177
      %p186 = scmp.eq.s32.totalorder %s37, 3
      %p187 = por %p185, %p186
      %p188 = scmp.ne.s32.totalorder %s177, %s178
      %p189 = scmp.eq.s32.totalorder %s37, 0
      %p190 = por %p188, %p189
      %p191 = scmp.ne.s32.totalorder %s177, %s178
      %p192 = scmp.eq.s32.totalorder %s38, 3
      %p193 = por %p191, %p192
      %p195 = scmp.ne.s32.totalorder %s178, %s194
      %p196 = scmp.eq.s32.totalorder %s38, 0
      %p197 = por %p195, %p196
      %s198 = ssub.s32 %s40, %s47
      %p199 = scmp.eq.s32.totalorder %s198, 0
      %s201 = sadd.s32 %s200, 1
      %s202 = scalar_select %p199, %s200, %s201
      %p205 = pneg %p199
      %p206 = scmp.eq.s32.totalorder %s32, 3
      %p207 = por %p205, %p206
      %p208 = scmp.ne.s32.totalorder %s200, %s203
      %p209 = scmp.eq.s32.totalorder %s32, 0
      %p210 = por %p208, %p209
      %p211 = scmp.ne.s32.totalorder %s200, %s203
      %p212 = scmp.eq.s32.totalorder %s37, 3
      %p213 = por %p211, %p212
      %p214 = scmp.ne.s32.totalorder %s203, %s204
      %p215 = scmp.eq.s32.totalorder %s37, 0
      %p216 = por %p214, %p215
      %p217 = scmp.ne.s32.totalorder %s203, %s204
      %p218 = scmp.eq.s32.totalorder %s38, 3
      %p219 = por %p217, %p218
      %p221 = scmp.ne.s32.totalorder %s204, %s220
      %p222 = scmp.eq.s32.totalorder %s38, 0
      %p223 = por %p221, %p222
      %s224 = ssub.s32 %s40, %s47
      %p225 = scmp.eq.s32.totalorder %s224, 0
      %s227 = sadd.s32 %s226, 1
      %s228 = scalar_select %p225, %s226, %s227
      %p231 = pneg %p225
      %p232 = scmp.eq.s32.totalorder %s32, 3
      %p233 = por %p231, %p232
      %p234 = scmp.ne.s32.totalorder %s226, %s229
      %p235 = scmp.eq.s32.totalorder %s32, 0
      %p236 = por %p234, %p235
      %p237 = scmp.ne.s32.totalorder %s226, %s229
      %p238 = scmp.eq.s32.totalorder %s37, 3
      %p239 = por %p237, %p238
      %p240 = scmp.ne.s32.totalorder %s229, %s230
      %p241 = scmp.eq.s32.totalorder %s37, 0
      %p242 = por %p240, %p241
      %p243 = scmp.ne.s32.totalorder %s229, %s230
      %p244 = scmp.eq.s32.totalorder %s38, 3
      %p245 = por %p243, %p244
      %p247 = scmp.ne.s32.totalorder %s230, %s246
      %p248 = scmp.eq.s32.totalorder %s38, 0
      %p249 = por %p247, %p248
      %s250 = ssub.s32 %s40, %s47
      %p251 = scmp.eq.s32.totalorder %s250, 0
      %s253 = sadd.s32 %s252, 1
      %s254 = scalar_select %p251, %s252, %s253
      %p257 = pneg %p251
      %p258 = scmp.eq.s32.totalorder %s32, 3
      %p259 = por %p257, %p258
      %p260 = scmp.ne.s32.totalorder %s252, %s255
      %p261 = scmp.eq.s32.totalorder %s32, 0
      %p262 = por %p260, %p261
      %p263 = scmp.ne.s32.totalorder %s252, %s255
      %p264 = scmp.eq.s32.totalorder %s37, 3
      %p265 = por %p263, %p264
      %p266 = scmp.ne.s32.totalorder %s255, %s256
      %p267 = scmp.eq.s32.totalorder %s37, 0
      %p268 = por %p266, %p267
      %p269 = scmp.ne.s32.totalorder %s255, %s256
      %p270 = scmp.eq.s32.totalorder %s38, 3
      %p271 = por %p269, %p270
      %p273 = scmp.ne.s32.totalorder %s256, %s272
      %p274 = scmp.eq.s32.totalorder %s38, 0
      %p275 = por %p273, %p274
      %s276 = ssub.s32 %s40, %s47
      %p277 = scmp.eq.s32.totalorder %s276, 0
      %s279 = sadd.s32 %s278, 1
      %s280 = scalar_select %p277, %s278, %s279
      %p283 = pneg %p277
      %p284 = scmp.eq.s32.totalorder %s32, 3
      %p285 = por %p283, %p284
      %p286 = scmp.ne.s32.totalorder %s278, %s281
      %p287 = scmp.eq.s32.totalorder %s32, 0
      %p288 = por %p286, %p287
      %p289 = scmp.ne.s32.totalorder %s278, %s281
      %p290 = scmp.eq.s32.totalorder %s37, 3
      %p291 = por %p289, %p290
      %p292 = scmp.ne.s32.totalorder %s281, %s282
      %p293 = scmp.eq.s32.totalorder %s37, 0
      %p294 = por %p292, %p293
      %p295 = scmp.ne.s32.totalorder %s281, %s282
      %p296 = scmp.eq.s32.totalorder %s38, 3
      %p297 = por %p295, %p296
      %p299 = scmp.ne.s32.totalorder %s282, %s298
      %p300 = scmp.eq.s32.totalorder %s38, 0
      %p301 = por %p299, %p300
      %s302 = ssub.s32 %s40, %s47
      %p303 = scmp.eq.s32.totalorder %s302, 0
      %s305 = sadd.s32 %s304, 1
      %s306 = scalar_select %p303, %s304, %s305
      %p309 = pneg %p303
      %p310 = scmp.eq.s32.totalorder %s32, 3
      %p311 = por %p309, %p310
      %p312 = scmp.ne.s32.totalorder %s304, %s307
      %p313 = scmp.eq.s32.totalorder %s32, 0
      %p314 = por %p312, %p313
      %p315 = scmp.ne.s32.totalorder %s304, %s307
      %p316 = scmp.eq.s32.totalorder %s37, 3
      %p317 = por %p315, %p316
      %p318 = scmp.ne.s32.totalorder %s307, %s308
      %p319 = scmp.eq.s32.totalorder %s37, 0
      %p320 = por %p318, %p319
      %p321 = scmp.ne.s32.totalorder %s307, %s308
      %p322 = scmp.eq.s32.totalorder %s38, 3
      %p323 = por %p321, %p322
      %p325 = scmp.ne.s32.totalorder %s308, %s324
      %p326 = scmp.eq.s32.totalorder %s38, 0
      %p327 = por %p325, %p326
      %s328 = ssub.s32 %s40, %s47
      %p329 = scmp.eq.s32.totalorder %s328, 0
      %s331 = sadd.s32 %s330, 1
      %s332 = scalar_select %p329, %s330, %s331
      %p335 = pneg %p329
      %p336 = scmp.eq.s32.totalorder %s32, 3
      %p337 = por %p335, %p336
      %p338 = scmp.ne.s32.totalorder %s330, %s333
      %p339 = scmp.eq.s32.totalorder %s32, 0
      %p340 = por %p338, %p339
      %p341 = scmp.ne.s32.totalorder %s330, %s333
      %p342 = scmp.eq.s32.totalorder %s37, 3
      %p343 = por %p341, %p342
      %p344 = scmp.ne.s32.totalorder %s333, %s334
      %p345 = scmp.eq.s32.totalorder %s37, 0
      %p346 = por %p344, %p345
      %p347 = scmp.ne.s32.totalorder %s333, %s334
      %p348 = scmp.eq.s32.totalorder %s38, 3
      %p349 = por %p347, %p348
      %p351 = scmp.ne.s32.totalorder %s334, %s350
      %p352 = scmp.eq.s32.totalorder %s38, 0
      %p353 = por %p351, %p352
      %s355 = sadd.s32 %s354, 1
      %p358 = scmp.eq.s32.totalorder %s32, 3
      %p359 = scmp.ne.s32.totalorder %s354, %s356
      %p360 = scmp.eq.s32.totalorder %s32, 0
      %p361 = por %p359, %p360
      %p362 = scmp.ne.s32.totalorder %s354, %s356
      %p363 = scmp.eq.s32.totalorder %s37, 3
      %p364 = por %p362, %p363
      %p365 = scmp.ne.s32.totalorder %s356, %s357
      %p366 = scmp.eq.s32.totalorder %s37, 0
      %p367 = por %p365, %p366
      %p368 = scmp.ne.s32.totalorder %s356, %s357
      %p369 = scmp.eq.s32.totalorder %s38, 3
      %p370 = por %p368, %p369
      %p372 = scmp.ne.s32.totalorder %s357, %s371
      %p373 = scmp.eq.s32.totalorder %s38, 0
      %p374 = por %p372, %p373
      %s376 = sadd.s32 %s375, 1
      %p379 = scmp.eq.s32.totalorder %s32, 3
      %p380 = scmp.ne.s32.totalorder %s375, %s377
      %p381 = scmp.eq.s32.totalorder %s32, 0
      %p382 = por %p380, %p381
      %p383 = scmp.ne.s32.totalorder %s375, %s377
      %p384 = scmp.eq.s32.totalorder %s37, 3
      %p385 = por %p383, %p384
      %p386 = scmp.ne.s32.totalorder %s377, %s378
      %p387 = scmp.eq.s32.totalorder %s37, 0
      %p388 = por %p386, %p387
      %p389 = scmp.ne.s32.totalorder %s377, %s378
      %p390 = scmp.eq.s32.totalorder %s38, 3
      %p391 = por %p389, %p390
      %p393 = scmp.ne.s32.totalorder %s378, %s392
      %p394 = scmp.eq.s32.totalorder %s38, 0
      %p395 = por %p393, %p394
      %s396 = ssub.s32 %s39, %s51
      %p397 = scmp.eq.s32.totalorder %s396, 0
      %s399 = sadd.s32 %s398, 1
      %s400 = scalar_select %p397, %s398, %s399
      %p403 = pneg %p397
      %p404 = scmp.eq.s32.totalorder %s32, 3
      %p405 = por %p403, %p404
      %p406 = scmp.ne.s32.totalorder %s398, %s401
      %p407 = scmp.eq.s32.totalorder %s32, 0
      %p408 = por %p406, %p407
      %p409 = scmp.ne.s32.totalorder %s398, %s401
      %p410 = scmp.eq.s32.totalorder %s37, 3
      %p411 = por %p409, %p410
      %p412 = scmp.ne.s32.totalorder %s401, %s402
      %p413 = scmp.eq.s32.totalorder %s37, 0
      %p414 = por %p412, %p413
      %p415 = scmp.ne.s32.totalorder %s401, %s402
      %p416 = scmp.eq.s32.totalorder %s38, 3
      %p417 = por %p415, %p416
      %p419 = scmp.ne.s32.totalorder %s402, %s418
      %p420 = scmp.eq.s32.totalorder %s38, 0
      %p421 = por %p419, %p420
      %p422 = scmp.le.s32.totalorder 1, %s32
      %p423 = scmp.lt.s32.totalorder %s32, 5
      %p424 = pnand %p422, %p423
      %p425 = pneg %p424
      // Predicated region
      $region9: #{text_encoder.1} parent=5 // pred_check
        _
      $region10: #{text_encoder.1} parent=5 // pred_check_branch
        %427 = sbr.rel (%p424) target = $region12
      $region11: #{text_encoder.1} parent=5 // pred_region
        %s428 = ssub.s32 %s32, 1
        // Predicated region
        $region13: #{text_encoder.1} parent=11 // pred_check
          %p429 = pneg %p91
        $region14: #{text_encoder.1} parent=11 // pred_check_branch
          %431 = sbr.rel (%p429) target = $region16
        $region15: #{text_encoder.1} parent=11 // pred_region
          _
        $region16: #{text_encoder.1} parent=11 // pred_fallthru
          _
        // Predicated region
        $region17: #{text_encoder.1} parent=11 // pred_check
          %p432 = pneg %p112
        $region18: #{text_encoder.1} parent=11 // pred_check_branch
          %434 = sbr.rel (%p432) target = $region20
        $region19: #{text_encoder.1} parent=11 // pred_region
          _
        $region20: #{text_encoder.1} parent=11 // pred_fallthru
          _
        // Predicated region
        $region21: #{text_encoder.1} parent=11 // pred_check
          %p435 = pneg %p367
        $region22: #{text_encoder.1} parent=11 // pred_check_branch
          %437 = sbr.rel (%p435) target = $region24
        $region23: #{text_encoder.1} parent=11 // pred_region
          _
        $region24: #{text_encoder.1} parent=11 // pred_fallthru
          _
        // Predicated region
        $region25: #{text_encoder.1} parent=11 // pred_check
          %p438 = pneg %p388
        $region26: #{text_encoder.1} parent=11 // pred_check_branch
          %440 = sbr.rel (%p438) target = $region28
        $region27: #{text_encoder.1} parent=11 // pred_region
          _
        $region28: #{text_encoder.1} parent=11 // pred_fallthru
          _
      $region12: #{text_encoder.1} parent=5 // pred_fallthru
        _
      %p441 = scmp.lt.s32.totalorder %s32, 4
      // Predicated region
      $region29: #{text_encoder.1} parent=5 // pred_check
        %p442 = pneg %p441
      $region30: #{text_encoder.1} parent=5 // pred_check_branch
        %444 = sbr.rel (%p442) target = $region32
      $region31: #{text_encoder.1} parent=5 // pred_region
        // Predicated region
        $region33: #{text_encoder.1} parent=31 // pred_check
          %p445 = pneg %p64
        $region34: #{text_encoder.1} parent=31 // pred_check_branch
          %447 = sbr.rel (%p445) target = $region36
        $region35: #{text_encoder.1} parent=31 // pred_region
          %p448 = scmp.lt.s32.totalorder %s39, 1
          %s449 = scalar_select %p448, %s39, 1
          %s450 = smul.addr %s449, 8
          %s451 = scalar_lea.vmem %s1, %s450
        $region36: #{text_encoder.1} parent=31 // pred_fallthru
          _
        // Predicated region
        $region37: #{text_encoder.1} parent=31 // pred_check
          %p452 = pneg %p132
        $region38: #{text_encoder.1} parent=31 // pred_check_branch
          %454 = sbr.rel (%p452) target = $region40
        $region39: #{text_encoder.1} parent=31 // pred_region
          %p455 = scmp.lt.s32.totalorder %s40, 1
          %s456 = scalar_select %p455, %s40, 1
          %s457 = smul.addr %s456, 16
          %s458 = smul.addr %s457, 4
          %s459 = scalar_lea.vmem %s4, %s458
        $region40: #{text_encoder.1} parent=31 // pred_fallthru
          _
        // Predicated region
        $region41: #{text_encoder.1} parent=31 // pred_check
          %p460 = pneg %p158
        $region42: #{text_encoder.1} parent=31 // pred_check_branch
          %462 = sbr.rel (%p460) target = $region44
        $region43: #{text_encoder.1} parent=31 // pred_region
          %p463 = scmp.lt.s32.totalorder %s40, 1
          %s464 = scalar_select %p463, %s40, 1
          %s465 = smul.addr %s464, 16
          %s466 = smul.addr %s465, 4
          %s467 = scalar_lea.vmem %s5, %s466
        $region44: #{text_encoder.1} parent=31 // pred_fallthru
          _
        // Predicated region
        $region45: #{text_encoder.1} parent=31 // pred_check
          %p468 = pneg %p184
        $region46: #{text_encoder.1} parent=31 // pred_check_branch
          %470 = sbr.rel (%p468) target = $region48
        $region47: #{text_encoder.1} parent=31 // pred_region
          %p471 = scmp.lt.s32.totalorder %s40, 1
          %s472 = scalar_select %p471, %s40, 1
          %s473 = smul.addr %s472, 16
          %s474 = smul.addr %s473, 4
          %s475 = scalar_lea.vmem %s6, %s474
        $region48: #{text_encoder.1} parent=31 // pred_fallthru
          _
        // Predicated region
        $region49: #{text_encoder.1} parent=31 // pred_check
          %p476 = pneg %p210
        $region50: #{text_encoder.1} parent=31 // pred_check_branch
          %478 = sbr.rel (%p476) target = $region52
        $region51: #{text_encoder.1} parent=31 // pred_region
          %p479 = scmp.lt.s32.totalorder %s40, 1
          %s480 = scalar_select %p479, %s40, 1
          %s481 = smul.addr %s480, 12
          %s482 = scalar_lea.vmem %s7, %s481
        $region52: #{text_encoder.1} parent=31 // pred_fallthru
          _
        // Predicated region
        $region53: #{text_encoder.1} parent=31 // pred_check
          %p483 = pneg %p236
        $region54: #{text_encoder.1} parent=31 // pred_check_branch
          %485 = sbr.rel (%p483) target = $region56
        $region55: #{text_encoder.1} parent=31 // pred_region
          %p486 = scmp.lt.s32.totalorder %s40, 1
          %s487 = scalar_select %p486, %s40, 1
          %s488 = smul.addr %s487, 4
          %s489 = smul.addr %s488, 4
          %s490 = scalar_lea.vmem %s8, %s489
        $region56: #{text_encoder.1} parent=31 // pred_fallthru
          _
        // Predicated region
        $region57: #{text_encoder.1} parent=31 // pred_check
          %p491 = pneg %p262
        $region58: #{text_encoder.1} parent=31 // pred_check_branch
          %493 = sbr.rel (%p491) target = $region60
        $region59: #{text_encoder.1} parent=31 // pred_region
          %p494 = scmp.lt.s32.totalorder %s40, 1
          %s495 = scalar_select %p494, %s40, 1
          %s496 = smul.addr %s495, 4
          %s497 = smul.addr %s496, 4
          %s498 = scalar_lea.vmem %s9, %s497
        $region60: #{text_encoder.1} parent=31 // pred_fallthru
          _
        // Predicated region
        $region61: #{text_encoder.1} parent=31 // pred_check
          %p499 = pneg %p288
        $region62: #{text_encoder.1} parent=31 // pred_check_branch
          %501 = sbr.rel (%p499) target = $region64
        $region63: #{text_encoder.1} parent=31 // pred_region
          %p502 = scmp.lt.s32.totalorder %s40, 1
          %s503 = scalar_select %p502, %s40, 1
          %s504 = scalar_lea.vmem %s10, %s503
        $region64: #{text_encoder.1} parent=31 // pred_fallthru
          _
        // Predicated region
        $region65: #{text_encoder.1} parent=31 // pred_check
          %p505 = pneg %p314
        $region66: #{text_encoder.1} parent=31 // pred_check_branch
          %507 = sbr.rel (%p505) target = $region68
        $region67: #{text_encoder.1} parent=31 // pred_region
          %p508 = scmp.lt.s32.totalorder %s40, 1
          %s509 = scalar_select %p508, %s40, 1
          %s510 = smul.addr %s509, 16
          %s511 = smul.addr %s510, 4
          %s512 = scalar_lea.vmem %s11, %s511
        $region68: #{text_encoder.1} parent=31 // pred_fallthru
          _
        // Predicated region
        $region69: #{text_encoder.1} parent=31 // pred_check
          %p513 = pneg %p340
        $region70: #{text_encoder.1} parent=31 // pred_check_branch
          %515 = sbr.rel (%p513) target = $region72
        $region71: #{text_encoder.1} parent=31 // pred_region
          %p516 = scmp.lt.s32.totalorder %s40, 1
          %s517 = scalar_select %p516, %s40, 1
          %s518 = smul.addr %s517, 8
          %s519 = scalar_lea.vmem %s12, %s518
        $region72: #{text_encoder.1} parent=31 // pred_fallthru
          _
      $region32: #{text_encoder.1} parent=5 // pred_fallthru
        _
      %p520 = scmp.le.s32.totalorder 1, %s32
      %p521 = scmp.lt.s32.totalorder %s32, 5
      %p522 = pnand %p520, %p521
      %p523 = pneg %p522
      // Predicated region
      $region73: #{text_encoder.1} parent=5 // pred_check
        _
      $region74: #{text_encoder.1} parent=5 // pred_check_branch
        %525 = sbr.rel (%p522) target = $region76
      $region75: #{text_encoder.1} parent=5 // pred_region
        %s526 = ssub.s32 %s32, 1
        %p527 = scmp.lt.s32.totalorder %s41, 1
        %s528 = scalar_select %p527, %s41, 1
        %s529 = smul.addr %s528, 8
        %s530 = scalar_lea.vmem %s1, %s529
        %p531 = pneg %p70
        %p532 = pneg %p67
        %p533 = pneg %p91
        %p534 = pneg %p88
        %p535 = pneg %p112
        %p536 = pneg %p109
        %p537 = scmp.lt.s32.totalorder %s42, 1
        %s538 = scalar_select %p537, %s42, 1
        %s539 = smul.addr %s538, 16
        %s540 = smul.addr %s539, 4
        %s541 = scalar_lea.vmem %s4, %s540
        %p542 = pneg %p138
        %p543 = pneg %p135
        %p544 = scmp.lt.s32.totalorder %s42, 1
        %s545 = scalar_select %p544, %s42, 1
        %s546 = smul.addr %s545, 16
        %s547 = smul.addr %s546, 4
        %s548 = scalar_lea.vmem %s5, %s547
        %p549 = pneg %p164
        %p550 = pneg %p161
        %p551 = scmp.lt.s32.totalorder %s42, 1
        %s552 = scalar_select %p551, %s42, 1
        %s553 = smul.addr %s552, 16
        %s554 = smul.addr %s553, 4
        %s555 = scalar_lea.vmem %s6, %s554
        %p556 = pneg %p190
        %p557 = pneg %p187
        %p558 = scmp.lt.s32.totalorder %s42, 1
        %s559 = scalar_select %p558, %s42, 1
        %s560 = smul.addr %s559, 12
        %s561 = scalar_lea.vmem %s7, %s560
        %p562 = pneg %p216
        %p563 = pneg %p213
        %p564 = scmp.lt.s32.totalorder %s42, 1
        %s565 = scalar_select %p564, %s42, 1
        %s566 = smul.addr %s565, 4
        %s567 = smul.addr %s566, 4
        %s568 = scalar_lea.vmem %s8, %s567
        %p569 = pneg %p242
        %p570 = pneg %p239
        %p571 = scmp.lt.s32.totalorder %s42, 1
        %s572 = scalar_select %p571, %s42, 1
        %s573 = smul.addr %s572, 4
        %s574 = smul.addr %s573, 4
        %s575 = scalar_lea.vmem %s9, %s574
        %p576 = pneg %p268
        %p577 = pneg %p265
        %p578 = scmp.lt.s32.totalorder %s42, 1
        %s579 = scalar_select %p578, %s42, 1
        %s580 = scalar_lea.vmem %s10, %s579
        %p581 = pneg %p294
        %p582 = pneg %p291
        %p583 = scmp.lt.s32.totalorder %s42, 1
        %s584 = scalar_select %p583, %s42, 1
        %s585 = smul.addr %s584, 16
        %s586 = smul.addr %s585, 4
        %s587 = scalar_lea.vmem %s11, %s586
        %p588 = pneg %p320
        %p589 = pneg %p317
        %p590 = scmp.lt.s32.totalorder %s42, 1
        %s591 = scalar_select %p590, %s42, 1
        %s592 = smul.addr %s591, 8
        %s593 = scalar_lea.vmem %s12, %s592
        %p594 = pneg %p346
        %p595 = pneg %p343
        %p596 = pneg %p367
        %p597 = pneg %p364
        %p598 = pneg %p388
        %p599 = pneg %p385
        %p600 = pneg %p414
        %p601 = pneg %p411
        %s602 = sand.u32 %s401, 1
        %s603 = scalar_lea.sflag [#allocation6], %s602
        %s604 = sand.u32 %s401, 1
        %s605 = scalar_lea.vmem [#allocation5], %s604
        %p606 = scmp.lt.s32.totalorder %s41, 1
        %s607 = scalar_select %p606, %s41, 1
        %s608 = smul.addr %s607, 8
        %s609 = scalar_lea.vmem %s1, %s608
        %p610 = scmp.lt.s32.totalorder %s42, 1
        %s611 = scalar_select %p610, %s42, 1
        %s612 = smul.addr %s611, 16
        %s613 = smul.addr %s612, 4
        %s614 = scalar_lea.vmem %s4, %s613
        %p615 = scmp.lt.s32.totalorder %s42, 1
        %s616 = scalar_select %p615, %s42, 1
        %s617 = smul.addr %s616, 16
        %s618 = smul.addr %s617, 4
        %s619 = scalar_lea.vmem %s5, %s618
        %p620 = scmp.lt.s32.totalorder %s42, 1
        %s621 = scalar_select %p620, %s42, 1
        %s622 = smul.addr %s621, 16
        %s623 = smul.addr %s622, 4
        %s624 = scalar_lea.vmem %s6, %s623
        %p625 = scmp.lt.s32.totalorder %s42, 1
        %s626 = scalar_select %p625, %s42, 1
        %s627 = smul.addr %s626, 12
        %s628 = scalar_lea.vmem %s7, %s627
        %p629 = scmp.lt.s32.totalorder %s42, 1
        %s630 = scalar_select %p629, %s42, 1
        %s631 = smul.addr %s630, 4
        %s632 = smul.addr %s631, 4
        %s633 = scalar_lea.vmem %s8, %s632
        %p634 = scmp.lt.s32.totalorder %s42, 1
        %s635 = scalar_select %p634, %s42, 1
        %s636 = smul.addr %s635, 4
        %s637 = smul.addr %s636, 4
        %s638 = scalar_lea.vmem %s9, %s637
        %p639 = scmp.lt.s32.totalorder %s42, 1
        %s640 = scalar_select %p639, %s42, 1
        %s641 = scalar_lea.vmem %s10, %s640
        %p642 = scmp.lt.s32.totalorder %s42, 1
        %s643 = scalar_select %p642, %s42, 1
        %s644 = smul.addr %s643, 16
        %s645 = smul.addr %s644, 4
        %s646 = scalar_lea.vmem %s11, %s645
        %p647 = scmp.lt.s32.totalorder %s42, 1
        %s648 = scalar_select %p647, %s42, 1
        %s649 = smul.addr %s648, 8
        %s650 = scalar_lea.vmem %s12, %s649
        %p652 = scmp.eq.s32.totalorder %s42, 0
        // Predicated region
        $region77: #{text_encoder.1} parent=75 // pred_check
          %p653 = pneg %p652
        $region78: #{text_encoder.1} parent=75 // pred_check_branch
          %655 = sbr.rel (%p653) target = $region80
        $region79: #{text_encoder.1} parent=75 // pred_region
          %v656 = vld [vmem:[%s609] sm:$0xff]
          %v657 = vld [vmem:[%s2] sm:$0xff]
          %v658 = vadd.f32 %v656, %v657
          %vm659 = vcmask 261120
          %660 = vst.msk [vmem:[#allocation2] sm:$0xff] %vm659, %v658
        $region80: #{text_encoder.1} parent=75 // pred_fallthru
          _
        %v661 = vld [vmem:[#allocation2] sm:$0xff]
        %v662 = vld [vmem:[%s650] sm:$0x3f]
        %v663 = vld [vmem:[%s628] sm:$0x1]
        %v664 = vld [vmem:[%s628 + $0x1] sm:$0x1]
        %v665 = vld [vmem:[%s628 + $0x2] sm:$0x1]
        %v666 = vld [vmem:[%s628 + $0x3] sm:$0x1]
        %v667 = vld [vmem:[%s628 + $0x4] sm:$0x1]
        %v668 = vld [vmem:[%s628 + $0x5] sm:$0x1]
        %v669 = vld [vmem:[%s628 + $0x6] sm:$0x1]
        %v670 = vld [vmem:[%s628 + $0x7] sm:$0x1]
        %v671 = vld [vmem:[%s628 + $0x8] sm:$0x1]
        %v672 = vld [vmem:[%s628 + $0x9] sm:$0x1]
        %v673 = vld [vmem:[%s628 + $0xa] sm:$0x1]
        %v674 = vld [vmem:[%s628 + $0xb] sm:$0x1]
        %vm675 = vcmask 261120
        %v676 = vsel %vm675, %v661, 0.0
        %677 = vadd.xlane.f32.xlu0 %v676
        %v678 = vpop.xlane.xlu0 %677
        %v679 = vrcp.pop 32.0
        %v680 = vmul.f32 32.0, %v679
        %v681 = vsub.f32 1.0, %v680
        %v682 = vmul.f32 %v679, %v681
        %v683 = vadd.f32 %v679, %v682
        %vm684 = vweird.f32 %v679
        %v685 = vsel %vm684, %v679, %v683
        %v686 = vmul.f32 %v678, %v685
        %v687 = vsub.f32 %v661, %v686
        %v688 = vmul.f32 %v687, %v687
        %v689 = vsel %vm675, %v688, 0.0
        %690 = vadd.xlane.f32.xlu0 %v689
        %v691 = vpop.xlane.xlu0 %690
        %v692 = vmul.f32 %v691, %v685
        %v693 = vadd.f32 %v692, 1e-05
        %v694 = vrsqrt.pop %v693
        %v695 = vmul.f32 %v694, %v693
        %v696 = vmul.f32 %v695, %v694
        %v697 = vmul.f32 0.5, %v696
        %v698 = vsub.f32 1.5, %v697
        %v699 = vmul.f32 %v694, %v698
        %vm700 = vweird.f32 %v693
        %vm701 = vweird.f32 %v694
        %vm702 = vmor %vm700, %vm701
        %v703 = vsel %vm702, %v694, %v699
        %v704 = vmul.f32 %v687, %v703
        %v705 = vperm.slane %v662, 0
        %v706 = vmul.f32 %v704, %v705
        %v707 = vperm.slane %v662, 1
        %v708 = vadd.f32 %v706, %v707
        %v709 = vpack.c.bf16 %v708, %v708
        %v710 = vld [vmem:[%s614] sm:$0xf]
        %v711 = vld [vmem:[%s614 + $0x4] sm:$0xf]
        %v712 = vld [vmem:[%s614 + $0x8] sm:$0xf]
        %v713 = vld [vmem:[%s614 + $0xc] sm:$0xf]
        %v714 = vld [vmem:[%s614 + $0x10] sm:$0xf]
        %v715 = vld [vmem:[%s614 + $0x14] sm:$0xf]
        %v716 = vld [vmem:[%s614 + $0x18] sm:$0xf]
        %v717 = vld [vmem:[%s614 + $0x1c] sm:$0xf]
        %v718 = vld [vmem:[%s614 + $0x20] sm:$0xf]
        %v719 = vld [vmem:[%s614 + $0x24] sm:$0xf]
        %v720 = vld [vmem:[%s614 + $0x28] sm:$0xf]
        %v721 = vld [vmem:[%s614 + $0x2c] sm:$0xf]
        %v722 = vld [vmem:[%s614 + $0x30] sm:$0xf]
        %v723 = vld [vmem:[%s614 + $0x34] sm:$0xf]
        %v724 = vld [vmem:[%s614 + $0x38] sm:$0xf]
        %v725 = vld [vmem:[%s614 + $0x3c] sm:$0xf]
        %v730 = vperm.slane %v663, 0
        %v731 = vperm.slane %v664, 0
        %v732 = vperm.slane %v665, 0
        %v733 = vperm.slane %v666, 0
        %v742 = vunpack.c.l.b16 %v710
        %v743 = vunpack.c.l.b16 %v711
        %v744 = vunpack.c.l.b16 %v712
        %v745 = vunpack.c.l.b16 %v713
        %v746 = vpack.c.b16 %v743, %v742
        %v747 = vpack.c.b16 %v745, %v744
        %v751 = vsel %vm675, %v709, 0
        %753 = vmatpush.bf16.msra.mxu0 0
        %754 = vmatpush.bf16.msra.mxu0 0
        %755 = vmatpush.bf16.msra.mxu0 0
        %756 = vmatpush.bf16.msra.mxu0 0
        %757 = vmatpush.bf16.msra.mxu0 0
        %758 = vmatpush.bf16.msra.mxu0 0
        %759 = vmatpush.bf16.msra.mxu0 %v747
        %760 = vmatpush.bf16.msra.mxu0 %v746
        %761 = vmatmul.bf16.gmra.mxu0 %v751
        %v762 = vpop.f32.mrf.mxu0
        %v763 = vadd.f32 %v730, %v762
        %v764 = vpop.f32.mrf.mxu0
        %765 = vdwg.mxu0
        %v770 = vunpack.c.l.b16 %v714
        %v771 = vunpack.c.l.b16 %v715
        %v772 = vunpack.c.l.b16 %v716
        %v773 = vunpack.c.l.b16 %v717
        %v774 = vpack.c.b16 %v771, %v770
        %v775 = vpack.c.b16 %v773, %v772
        %778 = vmatpush.bf16.msra.mxu0 0
        %779 = vmatpush.bf16.msra.mxu0 0
        %780 = vmatpush.bf16.msra.mxu0 0
        %781 = vmatpush.bf16.msra.mxu0 0
        %782 = vmatpush.bf16.msra.mxu0 0
        %783 = vmatpush.bf16.msra.mxu0 0
        %784 = vmatpush.bf16.msra.mxu0 %v775
        %785 = vmatpush.bf16.msra.mxu0 %v774
        %786 = vmatmul.bf16.gmra.mxu0 %v751
        %v787 = vpop.f32.mrf.mxu0
        %v788 = vadd.f32 %v731, %v787
        %v789 = vpop.f32.mrf.mxu0
        %790 = vdwg.mxu0
        %v795 = vunpack.c.l.b16 %v718
        %v796 = vunpack.c.l.b16 %v719
        %v797 = vunpack.c.l.b16 %v720
        %v798 = vunpack.c.l.b16 %v721
        %v799 = vpack.c.b16 %v796, %v795
        %v800 = vpack.c.b16 %v798, %v797
        %803 = vmatpush.bf16.msra.mxu0 0
        %804 = vmatpush.bf16.msra.mxu0 0
        %805 = vmatpush.bf16.msra.mxu0 0
        %806 = vmatpush.bf16.msra.mxu0 0
        %807 = vmatpush.bf16.msra.mxu0 0
        %808 = vmatpush.bf16.msra.mxu0 0
        %809 = vmatpush.bf16.msra.mxu0 %v800
        %810 = vmatpush.bf16.msra.mxu0 %v799
        %811 = vmatmul.bf16.gmra.mxu0 %v751
        %v812 = vpop.f32.mrf.mxu0
        %v813 = vadd.f32 %v732, %v812
        %v814 = vpop.f32.mrf.mxu0
        %815 = vdwg.mxu0
        %v820 = vunpack.c.l.b16 %v722
        %v821 = vunpack.c.l.b16 %v723
        %v822 = vunpack.c.l.b16 %v724
        %v823 = vunpack.c.l.b16 %v725
        %v824 = vpack.c.b16 %v821, %v820
        %v825 = vpack.c.b16 %v823, %v822
        %828 = vmatpush.bf16.msra.mxu0 0
        %829 = vmatpush.bf16.msra.mxu0 0
        %830 = vmatpush.bf16.msra.mxu0 0
        %831 = vmatpush.bf16.msra.mxu0 0
        %832 = vmatpush.bf16.msra.mxu0 0
        %833 = vmatpush.bf16.msra.mxu0 0
        %834 = vmatpush.bf16.msra.mxu0 %v825
        %835 = vmatpush.bf16.msra.mxu0 %v824
        %836 = vmatmul.bf16.gmra.mxu0 %v751
        %v837 = vpop.f32.mrf.mxu0
        %v838 = vadd.f32 %v733, %v837
        %v839 = vpop.f32.mrf.mxu0
        %840 = vdwg.mxu0
        %v841 = vld [vmem:[%s619] sm:$0xf]
        %v842 = vld [vmem:[%s619 + $0x4] sm:$0xf]
        %v843 = vld [vmem:[%s619 + $0x8] sm:$0xf]
        %v844 = vld [vmem:[%s619 + $0xc] sm:$0xf]
        %v845 = vld [vmem:[%s619 + $0x10] sm:$0xf]
        %v846 = vld [vmem:[%s619 + $0x14] sm:$0xf]
        %v847 = vld [vmem:[%s619 + $0x18] sm:$0xf]
        %v848 = vld [vmem:[%s619 + $0x1c] sm:$0xf]
        %v849 = vld [vmem:[%s619 + $0x20] sm:$0xf]
        %v850 = vld [vmem:[%s619 + $0x24] sm:$0xf]
        %v851 = vld [vmem:[%s619 + $0x28] sm:$0xf]
        %v852 = vld [vmem:[%s619 + $0x2c] sm:$0xf]
        %v853 = vld [vmem:[%s619 + $0x30] sm:$0xf]
        %v854 = vld [vmem:[%s619 + $0x34] sm:$0xf]
        %v855 = vld [vmem:[%s619 + $0x38] sm:$0xf]
        %v856 = vld [vmem:[%s619 + $0x3c] sm:$0xf]
        %v861 = vperm.slane %v667, 0
        %v862 = vperm.slane %v668, 0
        %v863 = vperm.slane %v669, 0
        %v864 = vperm.slane %v670, 0
        %v873 = vunpack.c.l.b16 %v841
        %v874 = vunpack.c.l.b16 %v842
        %v875 = vunpack.c.l.b16 %v843
        %v876 = vunpack.c.l.b16 %v844
        %v877 = vpack.c.b16 %v874, %v873
        %v878 = vpack.c.b16 %v876, %v875
        %881 = vmatpush.bf16.msra.mxu0 0
        %882 = vmatpush.bf16.msra.mxu0 0
        %883 = vmatpush.bf16.msra.mxu0 0
        %884 = vmatpush.bf16.msra.mxu0 0
        %885 = vmatpush.bf16.msra.mxu0 0
        %886 = vmatpush.bf16.msra.mxu0 0
        %887 = vmatpush.bf16.msra.mxu0 %v878
        %888 = vmatpush.bf16.msra.mxu0 %v877
        %889 = vmatmul.bf16.gmra.mxu0 %v751
        %v890 = vpop.f32.mrf.mxu0
        %v891 = vadd.f32 %v861, %v890
        %v892 = vpop.f32.mrf.mxu0
        %893 = vdwg.mxu0
        %v898 = vunpack.c.l.b16 %v845
        %v899 = vunpack.c.l.b16 %v846
        %v900 = vunpack.c.l.b16 %v847
        %v901 = vunpack.c.l.b16 %v848
        %v902 = vpack.c.b16 %v899, %v898
        %v903 = vpack.c.b16 %v901, %v900
        %906 = vmatpush.bf16.msra.mxu0 0
        %907 = vmatpush.bf16.msra.mxu0 0
        %908 = vmatpush.bf16.msra.mxu0 0
        %909 = vmatpush.bf16.msra.mxu0 0
        %910 = vmatpush.bf16.msra.mxu0 0
        %911 = vmatpush.bf16.msra.mxu0 0
        %912 = vmatpush.bf16.msra.mxu0 %v903
        %913 = vmatpush.bf16.msra.mxu0 %v902
        %914 = vmatmul.bf16.gmra.mxu0 %v751
        %v915 = vpop.f32.mrf.mxu0
        %v916 = vadd.f32 %v862, %v915
        %v917 = vpop.f32.mrf.mxu0
        %918 = vdwg.mxu0
        %v923 = vunpack.c.l.b16 %v849
        %v924 = vunpack.c.l.b16 %v850
        %v925 = vunpack.c.l.b16 %v851
        %v926 = vunpack.c.l.b16 %v852
        %v927 = vpack.c.b16 %v924, %v923
        %v928 = vpack.c.b16 %v926, %v925
        %931 = vmatpush.bf16.msra.mxu0 0
        %932 = vmatpush.bf16.msra.mxu0 0
        %933 = vmatpush.bf16.msra.mxu0 0
        %934 = vmatpush.bf16.msra.mxu0 0
        %935 = vmatpush.bf16.msra.mxu0 0
        %936 = vmatpush.bf16.msra.mxu0 0
        %937 = vmatpush.bf16.msra.mxu0 %v928
        %938 = vmatpush.bf16.msra.mxu0 %v927
        %939 = vmatmul.bf16.gmra.mxu0 %v751
        %v940 = vpop.f32.mrf.mxu0
        %v941 = vadd.f32 %v863, %v940
        %v942 = vpop.f32.mrf.mxu0
        %943 = vdwg.mxu0
        %v948 = vunpack.c.l.b16 %v853
        %v949 = vunpack.c.l.b16 %v854
        %v950 = vunpack.c.l.b16 %v855
        %v951 = vunpack.c.l.b16 %v856
        %v952 = vpack.c.b16 %v949, %v948
        %v953 = vpack.c.b16 %v951, %v950
        %956 = vmatpush.bf16.msra.mxu0 0
        %957 = vmatpush.bf16.msra.mxu0 0
        %958 = vmatpush.bf16.msra.mxu0 0
        %959 = vmatpush.bf16.msra.mxu0 0
        %960 = vmatpush.bf16.msra.mxu0 0
        %961 = vmatpush.bf16.msra.mxu0 0
        %962 = vmatpush.bf16.msra.mxu0 %v953
        %963 = vmatpush.bf16.msra.mxu0 %v952
        %964 = vmatmul.bf16.gmra.mxu0 %v751
        %v965 = vpop.f32.mrf.mxu0
        %v966 = vadd.f32 %v864, %v965
        %v967 = vpop.f32.mrf.mxu0
        %968 = vdwg.mxu0
        %v969 = vld [vmem:[%s624] sm:$0xf]
        %v970 = vld [vmem:[%s624 + $0x4] sm:$0xf]
        %v971 = vld [vmem:[%s624 + $0x8] sm:$0xf]
        %v972 = vld [vmem:[%s624 + $0xc] sm:$0xf]
        %v973 = vld [vmem:[%s624 + $0x10] sm:$0xf]
        %v974 = vld [vmem:[%s624 + $0x14] sm:$0xf]
        %v975 = vld [vmem:[%s624 + $0x18] sm:$0xf]
        %v976 = vld [vmem:[%s624 + $0x1c] sm:$0xf]
        %v977 = vld [vmem:[%s624 + $0x20] sm:$0xf]
        %v978 = vld [vmem:[%s624 + $0x24] sm:$0xf]
        %v979 = vld [vmem:[%s624 + $0x28] sm:$0xf]
        %v980 = vld [vmem:[%s624 + $0x2c] sm:$0xf]
        %v981 = vld [vmem:[%s624 + $0x30] sm:$0xf]
        %v982 = vld [vmem:[%s624 + $0x34] sm:$0xf]
        %v983 = vld [vmem:[%s624 + $0x38] sm:$0xf]
        %v984 = vld [vmem:[%s624 + $0x3c] sm:$0xf]
        %v989 = vperm.slane %v671, 0
        %v990 = vperm.slane %v672, 0
        %v991 = vperm.slane %v673, 0
        %v992 = vperm.slane %v674, 0
        %v1001 = vunpack.c.l.b16 %v969
        %v1002 = vunpack.c.l.b16 %v970
        %v1003 = vunpack.c.l.b16 %v971
        %v1004 = vunpack.c.l.b16 %v972
        %v1005 = vpack.c.b16 %v1002, %v1001
        %v1006 = vpack.c.b16 %v1004, %v1003
        %1009 = vmatpush.bf16.msra.mxu0 0
        %1010 = vmatpush.bf16.msra.mxu0 0
        %1011 = vmatpush.bf16.msra.mxu0 0
        %1012 = vmatpush.bf16.msra.mxu0 0
        %1013 = vmatpush.bf16.msra.mxu0 0
        %1014 = vmatpush.bf16.msra.mxu0 0
        %1015 = vmatpush.bf16.msra.mxu0 %v1006
        %1016 = vmatpush.bf16.msra.mxu0 %v1005
        %1017 = vmatmul.bf16.gmra.mxu0 %v751
        %v1018 = vpop.f32.mrf.mxu0
        %v1019 = vadd.f32 %v989, %v1018
        %v1020 = vpop.f32.mrf.mxu0
        %1021 = vdwg.mxu0
        %v1026 = vunpack.c.l.b16 %v973
        %v1027 = vunpack.c.l.b16 %v974
        %v1028 = vunpack.c.l.b16 %v975
        %v1029 = vunpack.c.l.b16 %v976
        %v1030 = vpack.c.b16 %v1027, %v1026
        %v1031 = vpack.c.b16 %v1029, %v1028
        %1034 = vmatpush.bf16.msra.mxu0 0
        %1035 = vmatpush.bf16.msra.mxu0 0
        %1036 = vmatpush.bf16.msra.mxu0 0
        %1037 = vmatpush.bf16.msra.mxu0 0
        %1038 = vmatpush.bf16.msra.mxu0 0
        %1039 = vmatpush.bf16.msra.mxu0 0
        %1040 = vmatpush.bf16.msra.mxu0 %v1031
        %1041 = vmatpush.bf16.msra.mxu0 %v1030
        %1042 = vmatmul.bf16.gmra.mxu0 %v751
        %v1043 = vpop.f32.mrf.mxu0
        %v1044 = vadd.f32 %v990, %v1043
        %v1045 = vpop.f32.mrf.mxu0
        %1046 = vdwg.mxu0
        %v1051 = vunpack.c.l.b16 %v977
        %v1052 = vunpack.c.l.b16 %v978
        %v1053 = vunpack.c.l.b16 %v979
        %v1054 = vunpack.c.l.b16 %v980
        %v1055 = vpack.c.b16 %v1052, %v1051
        %v1056 = vpack.c.b16 %v1054, %v1053
        %1059 = vmatpush.bf16.msra.mxu0 0
        %1060 = vmatpush.bf16.msra.mxu0 0
        %1061 = vmatpush.bf16.msra.mxu0 0
        %1062 = vmatpush.bf16.msra.mxu0 0
        %1063 = vmatpush.bf16.msra.mxu0 0
        %1064 = vmatpush.bf16.msra.mxu0 0
        %1065 = vmatpush.bf16.msra.mxu0 %v1056
        %1066 = vmatpush.bf16.msra.mxu0 %v1055
        %1067 = vmatmul.bf16.gmra.mxu0 %v751
        %v1068 = vpop.f32.mrf.mxu0
        %v1069 = vadd.f32 %v991, %v1068
        %v1070 = vpop.f32.mrf.mxu0
        %1071 = vdwg.mxu0
        %v1076 = vunpack.c.l.b16 %v981
        %v1077 = vunpack.c.l.b16 %v982
        %v1078 = vunpack.c.l.b16 %v983
        %v1079 = vunpack.c.l.b16 %v984
        %v1080 = vpack.c.b16 %v1077, %v1076
        %v1081 = vpack.c.b16 %v1079, %v1078
        %1084 = vmatpush.bf16.msra.mxu0 0
        %1085 = vmatpush.bf16.msra.mxu0 0
        %1086 = vmatpush.bf16.msra.mxu0 0
        %1087 = vmatpush.bf16.msra.mxu0 0
        %1088 = vmatpush.bf16.msra.mxu0 0
        %1089 = vmatpush.bf16.msra.mxu0 0
        %1090 = vmatpush.bf16.msra.mxu0 %v1081
        %1091 = vmatpush.bf16.msra.mxu0 %v1080
        %1092 = vmatmul.bf16.gmra.mxu0 %v751
        %v1093 = vpop.f32.mrf.mxu0
        %v1094 = vadd.f32 %v992, %v1093
        %v1095 = vpop.f32.mrf.mxu0
        %1096 = vdwg.mxu0
        %v1097 = vpack.c.bf16 %v763, %v763
        %v1098 = vpack.c.bf16 %v788, %v788
        %v1099 = vpack.c.bf16 %v813, %v813
        %v1100 = vpack.c.bf16 %v838, %v838
        %v1101 = vpack.c.bf16 %v891, %v891
        %v1102 = vpack.c.bf16 %v916, %v916
        %v1103 = vpack.c.bf16 %v941, %v941
        %v1104 = vpack.c.bf16 %v966, %v966
        %vm1105 = vcmask 64512
        %v1107 = vsel %vm1105, %v1097, 0
        %v1110 = vsel %vm1105, %v1101, 0
        %1112 = vmatpush.bf16.xpose.msra.mxu0 0
        %1113 = vmatpush.bf16.xpose.msra.mxu0 0
        %1114 = vmatpush.bf16.xpose.msra.mxu0 0
        %1115 = vmatpush.bf16.xpose.msra.mxu0 0
        %1116 = vmatpush.bf16.xpose.msra.mxu0 0
        %1117 = vmatpush.bf16.xpose.msra.mxu0 0
        %1118 = vmatpush.bf16.xpose.msra.mxu0 0
        %1119 = vmatpush.bf16.xpose.msra.mxu0 %v1110
        %1120 = vmatmul.bf16.gmra.mxu0 %v1107
        %v1121 = vpop.f32.mrf.mxu0
        %v1122 = vadd.f32 0.0, %v1121
        %v1123 = vpop.f32.mrf.mxu0
        %1124 = vdwg.mxu0
        %v1126 = vsel %vm1105, %v1098, 0
        %v1129 = vsel %vm1105, %v1102, 0
        %1131 = vmatpush.bf16.xpose.msra.mxu0 0
        %1132 = vmatpush.bf16.xpose.msra.mxu0 0
        %1133 = vmatpush.bf16.xpose.msra.mxu0 0
        %1134 = vmatpush.bf16.xpose.msra.mxu0 0
        %1135 = vmatpush.bf16.xpose.msra.mxu0 0
        %1136 = vmatpush.bf16.xpose.msra.mxu0 0
        %1137 = vmatpush.bf16.xpose.msra.mxu0 0
        %1138 = vmatpush.bf16.xpose.msra.mxu0 %v1129
        %1139 = vmatmul.bf16.gmra.mxu0 %v1126
        %v1140 = vpop.f32.mrf.mxu0
        %v1141 = vadd.f32 0.0, %v1140
        %v1142 = vpop.f32.mrf.mxu0
        %1143 = vdwg.mxu0
        %v1145 = vsel %vm1105, %v1099, 0
        %v1148 = vsel %vm1105, %v1103, 0
        %1150 = vmatpush.bf16.xpose.msra.mxu0 0
        %1151 = vmatpush.bf16.xpose.msra.mxu0 0
        %1152 = vmatpush.bf16.xpose.msra.mxu0 0
        %1153 = vmatpush.bf16.xpose.msra.mxu0 0
        %1154 = vmatpush.bf16.xpose.msra.mxu0 0
        %1155 = vmatpush.bf16.xpose.msra.mxu0 0
        %1156 = vmatpush.bf16.xpose.msra.mxu0 0
        %1157 = vmatpush.bf16.xpose.msra.mxu0 %v1148
        %1158 = vmatmul.bf16.gmra.mxu0 %v1145
        %v1159 = vpop.f32.mrf.mxu0
        %v1160 = vadd.f32 0.0, %v1159
        %v1161 = vpop.f32.mrf.mxu0
        %1162 = vdwg.mxu0
        %v1164 = vsel %vm1105, %v1100, 0
        %v1167 = vsel %vm1105, %v1104, 0
        %1169 = vmatpush.bf16.xpose.msra.mxu0 0
        %1170 = vmatpush.bf16.xpose.msra.mxu0 0
        %1171 = vmatpush.bf16.xpose.msra.mxu0 0
        %1172 = vmatpush.bf16.xpose.msra.mxu0 0
        %1173 = vmatpush.bf16.xpose.msra.mxu0 0
        %1174 = vmatpush.bf16.xpose.msra.mxu0 0
        %1175 = vmatpush.bf16.xpose.msra.mxu0 0
        %1176 = vmatpush.bf16.xpose.msra.mxu0 %v1167
        %1177 = vmatmul.bf16.gmra.mxu0 %v1164
        %v1178 = vpop.f32.mrf.mxu0
        %v1179 = vadd.f32 0.0, %v1178
        %v1180 = vpop.f32.mrf.mxu0
        %1181 = vdwg.mxu0
        %v1182 = vmul.f32 %v1122, 0.35355338
        %v1183 = vmul.f32 %v1141, 0.35355338
        %v1184 = vmul.f32 %v1160, 0.35355338
        %v1185 = vmul.f32 %v1179, 0.35355338
        %v1186 = vld [vmem:[%s3] sm:$0xff]
        %v1187 = vadd.f32 %v1182, %v1186
        %v1188 = vadd.f32 %v1183, %v1186
        %v1189 = vadd.f32 %v1184, %v1186
        %v1190 = vadd.f32 %v1185, %v1186
        %v1191 = vsel %vm1105, %v1187, -inf
        %1192 = vmax.xlane.f32.xlu0 %v1191
        %v1193 = vpop.xlane.xlu0 %1192
        %v1194 = vsel %vm1105, %v1188, -inf
        %1195 = vmax.xlane.f32.xlu0 %v1194
        %v1196 = vpop.xlane.xlu0 %1195
        %v1197 = vsel %vm1105, %v1189, -inf
        %1198 = vmax.xlane.f32.xlu0 %v1197
        %v1199 = vpop.xlane.xlu0 %1198
        %v1200 = vsel %vm1105, %v1190, -inf
        %1201 = vmax.xlane.f32.xlu0 %v1200
        %v1202 = vpop.xlane.xlu0 %1201
        %v1203 = vsub.f32 %v1187, %v1193
        %v1204 = vsub.f32 %v1188, %v1196
        %v1205 = vsub.f32 %v1189, %v1199
        %v1206 = vsub.f32 %v1190, %v1202
        %v1207 = vmul.f32 %v1203, 1.442695
        %v1208 = vpow.pop %v1207
        %v1209 = vmul.f32 %v1204, 1.442695
        %v1210 = vpow.pop %v1209
        %v1211 = vmul.f32 %v1205, 1.442695
        %v1212 = vpow.pop %v1211
        %v1213 = vmul.f32 %v1206, 1.442695
        %v1214 = vpow.pop %v1213
        %v1215 = vsel %vm1105, %v1208, 0.0
        %1216 = vadd.xlane.f32.xlu0 %v1215
        %v1217 = vpop.xlane.xlu0 %1216
        %v1218 = vsel %vm1105, %v1210, 0.0
        %1219 = vadd.xlane.f32.xlu0 %v1218
        %v1220 = vpop.xlane.xlu0 %1219
        %v1221 = vsel %vm1105, %v1212, 0.0
        %1222 = vadd.xlane.f32.xlu0 %v1221
        %v1223 = vpop.xlane.xlu0 %1222
        %v1224 = vsel %vm1105, %v1214, 0.0
        %1225 = vadd.xlane.f32.xlu0 %v1224
        %v1226 = vpop.xlane.xlu0 %1225
        %v1227 = vrcp.pop %v1217
        %v1228 = vmul.f32 %v1217, %v1227
        %v1229 = vsub.f32 1.0, %v1228
        %v1230 = vmul.f32 %v1227, %v1229
        %v1231 = vadd.f32 %v1227, %v1230
        %vm1232 = vweird.f32 %v1217
        %vm1233 = vweird.f32 %v1227
        %vm1234 = vmor %vm1232, %vm1233
        %v1235 = vsel %vm1234, %v1227, %v1231
        %v1236 = vand.u32 2147483647, %v1217
        %vm1237 = vcmp.eq.f32.partialorder %v1236, 8.507059e+37
        %v1238 = vand.u32 %v1217, 2147483648
        %v1239 = vor.u32 1.1754944e-38, %v1238
        %v1240 = vsel %vm1237, %v1239, %v1235
        %v1241 = vmul.f32 %v1208, %v1240
        %v1242 = vrcp.pop %v1220
        %v1243 = vmul.f32 %v1220, %v1242
        %v1244 = vsub.f32 1.0, %v1243
        %v1245 = vmul.f32 %v1242, %v1244
        %v1246 = vadd.f32 %v1242, %v1245
        %vm1247 = vweird.f32 %v1220
        %vm1248 = vweird.f32 %v1242
        %vm1249 = vmor %vm1247, %vm1248
        %v1250 = vsel %vm1249, %v1242, %v1246
        %v1251 = vand.u32 2147483647, %v1220
        %vm1252 = vcmp.eq.f32.partialorder %v1251, 8.507059e+37
        %v1253 = vand.u32 %v1220, 2147483648
        %v1254 = vor.u32 1.1754944e-38, %v1253
        %v1255 = vsel %vm1252, %v1254, %v1250
        %v1256 = vmul.f32 %v1210, %v1255
        %v1257 = vrcp.pop %v1223
        %v1258 = vmul.f32 %v1223, %v1257
        %v1259 = vsub.f32 1.0, %v1258
        %v1260 = vmul.f32 %v1257, %v1259
        %v1261 = vadd.f32 %v1257, %v1260
        %vm1262 = vweird.f32 %v1223
        %vm1263 = vweird.f32 %v1257
        %vm1264 = vmor %vm1262, %vm1263
        %v1265 = vsel %vm1264, %v1257, %v1261
        %v1266 = vand.u32 2147483647, %v1223
        %vm1267 = vcmp.eq.f32.partialorder %v1266, 8.507059e+37
        %v1268 = vand.u32 %v1223, 2147483648
        %v1269 = vor.u32 1.1754944e-38, %v1268
        %v1270 = vsel %vm1267, %v1269, %v1265
        %v1271 = vmul.f32 %v1212, %v1270
        %v1272 = vrcp.pop %v1226
        %v1273 = vmul.f32 %v1226, %v1272
        %v1274 = vsub.f32 1.0, %v1273
        %v1275 = vmul.f32 %v1272, %v1274
        %v1276 = vadd.f32 %v1272, %v1275
        %vm1277 = vweird.f32 %v1226
        %vm1278 = vweird.f32 %v1272
        %vm1279 = vmor %vm1277, %vm1278
        %v1280 = vsel %vm1279, %v1272, %v1276
        %v1281 = vand.u32 2147483647, %v1226
        %vm1282 = vcmp.eq.f32.partialorder %v1281, 8.507059e+37
        %v1283 = vand.u32 %v1226, 2147483648
        %v1284 = vor.u32 1.1754944e-38, %v1283
        %v1285 = vsel %vm1282, %v1284, %v1280
        %v1286 = vmul.f32 %v1214, %v1285
        %v1287 = vpack.c.bf16 %v1241, %v1241
        %v1288 = vpack.c.bf16 %v1256, %v1256
        %v1289 = vpack.c.bf16 %v1271, %v1271
        %v1290 = vpack.c.bf16 %v1286, %v1286
        %v1291 = vpack.c.bf16 %v1019, %v1019
        %v1292 = vpack.c.bf16 %v1044, %v1044
        %v1293 = vpack.c.bf16 %v1069, %v1069
        %v1294 = vpack.c.bf16 %v1094, %v1094
        %v1296 = vsel %vm1105, %v1287, 0
        %vm1298 = vcmask 1043456
        %v1300 = vsel %vm1298, %v1291, 0
        %1302 = vmatpush.bf16.msra.mxu0 0
        %1303 = vmatpush.bf16.msra.mxu0 0
        %1304 = vmatpush.bf16.msra.mxu0 0
        %1305 = vmatpush.bf16.msra.mxu0 0
        %1306 = vmatpush.bf16.msra.mxu0 0
        %1307 = vmatpush.bf16.msra.mxu0 0
        %1308 = vmatpush.bf16.msra.mxu0 0
        %1309 = vmatpush.bf16.msra.mxu0 %v1300
        %1310 = vmatmul.bf16.gmra.mxu0 %v1296
        %v1311 = vpop.f32.mrf.mxu0
        %v1312 = vadd.f32 0.0, %v1311
        %v1313 = vpop.f32.mrf.mxu0
        %1314 = vdwg.mxu0
        %v1316 = vsel %vm1105, %v1288, 0
        %v1319 = vsel %vm1298, %v1292, 0
        %1321 = vmatpush.bf16.msra.mxu0 0
        %1322 = vmatpush.bf16.msra.mxu0 0
        %1323 = vmatpush.bf16.msra.mxu0 0
        %1324 = vmatpush.bf16.msra.mxu0 0
        %1325 = vmatpush.bf16.msra.mxu0 0
        %1326 = vmatpush.bf16.msra.mxu0 0
        %1327 = vmatpush.bf16.msra.mxu0 0
        %1328 = vmatpush.bf16.msra.mxu0 %v1319
        %1329 = vmatmul.bf16.gmra.mxu0 %v1316
        %v1330 = vpop.f32.mrf.mxu0
        %v1331 = vadd.f32 0.0, %v1330
        %v1332 = vpop.f32.mrf.mxu0
        %1333 = vdwg.mxu0
        %v1335 = vsel %vm1105, %v1289, 0
        %v1338 = vsel %vm1298, %v1293, 0
        %1340 = vmatpush.bf16.msra.mxu0 0
        %1341 = vmatpush.bf16.msra.mxu0 0
        %1342 = vmatpush.bf16.msra.mxu0 0
        %1343 = vmatpush.bf16.msra.mxu0 0
        %1344 = vmatpush.bf16.msra.mxu0 0
        %1345 = vmatpush.bf16.msra.mxu0 0
        %1346 = vmatpush.bf16.msra.mxu0 0
        %1347 = vmatpush.bf16.msra.mxu0 %v1338
        %1348 = vmatmul.bf16.gmra.mxu0 %v1335
        %v1349 = vpop.f32.mrf.mxu0
        %v1350 = vadd.f32 0.0, %v1349
        %v1351 = vpop.f32.mrf.mxu0
        %1352 = vdwg.mxu0
        %v1354 = vsel %vm1105, %v1290, 0
        %v1357 = vsel %vm1298, %v1294, 0
        %1359 = vmatpush.bf16.msra.mxu0 0
        %1360 = vmatpush.bf16.msra.mxu0 0
        %1361 = vmatpush.bf16.msra.mxu0 0
        %1362 = vmatpush.bf16.msra.mxu0 0
        %1363 = vmatpush.bf16.msra.mxu0 0
        %1364 = vmatpush.bf16.msra.mxu0 0
        %1365 = vmatpush.bf16.msra.mxu0 0
        %1366 = vmatpush.bf16.msra.mxu0 %v1357
        %1367 = vmatmul.bf16.gmra.mxu0 %v1354
        %v1368 = vpop.f32.mrf.mxu0
        %v1369 = vadd.f32 0.0, %v1368
        %v1370 = vpop.f32.mrf.mxu0
        %1371 = vdwg.mxu0
        %v1372 = vpack.c.bf16 %v1312, %v1312
        %v1373 = vpack.c.bf16 %v1331, %v1331
        %v1374 = vpack.c.bf16 %v1350, %v1350
        %v1375 = vpack.c.bf16 %v1369, %v1369
        %v1376 = vld [vmem:[%s633] sm:$0xf]
        %v1377 = vld [vmem:[%s633 + $0x4] sm:$0xf]
        %v1378 = vld [vmem:[%s633 + $0x8] sm:$0xf]
        %v1379 = vld [vmem:[%s633 + $0xc] sm:$0xf]
        %v1381 = vsel %vm1105, %v1372, 0
        %v1384 = vsel %vm1298, %v1376, 0
        %1386 = vmatpush.bf16.msra.mxu0 0
        %1387 = vmatpush.bf16.msra.mxu0 0
        %1388 = vmatpush.bf16.msra.mxu0 0
        %1389 = vmatpush.bf16.msra.mxu0 0
        %1390 = vmatpush.bf16.msra.mxu0 0
        %1391 = vmatpush.bf16.msra.mxu0 0
        %1392 = vmatpush.bf16.msra.mxu0 0
        %1393 = vmatpush.bf16.msra.mxu0 %v1384
        %1394 = vmatmul.bf16.gmra.mxu0 %v1381
        %v1395 = vpop.f32.mrf.mxu0
        %v1396 = vadd.f32 0.0, %v1395
        %v1397 = vpop.f32.mrf.mxu0
        %1398 = vdwg.mxu0
        %v1400 = vsel %vm1105, %v1373, 0
        %v1403 = vsel %vm1298, %v1377, 0
        %1405 = vmatpush.bf16.msra.mxu0 0
        %1406 = vmatpush.bf16.msra.mxu0 0
        %1407 = vmatpush.bf16.msra.mxu0 0
        %1408 = vmatpush.bf16.msra.mxu0 0
        %1409 = vmatpush.bf16.msra.mxu0 0
        %1410 = vmatpush.bf16.msra.mxu0 0
        %1411 = vmatpush.bf16.msra.mxu0 0
        %1412 = vmatpush.bf16.msra.mxu0 %v1403
        %1413 = vmatmul.bf16.gmra.mxu0 %v1400
        %v1414 = vpop.f32.mrf.mxu0
        %v1415 = vadd.f32 0.0, %v1414
        %v1416 = vpop.f32.mrf.mxu0
        %1417 = vdwg.mxu0
        %v1419 = vsel %vm1105, %v1374, 0
        %v1422 = vsel %vm1298, %v1378, 0
        %1424 = vmatpush.bf16.msra.mxu0 0
        %1425 = vmatpush.bf16.msra.mxu0 0
        %1426 = vmatpush.bf16.msra.mxu0 0
        %1427 = vmatpush.bf16.msra.mxu0 0
        %1428 = vmatpush.bf16.msra.mxu0 0
        %1429 = vmatpush.bf16.msra.mxu0 0
        %1430 = vmatpush.bf16.msra.mxu0 0
        %1431 = vmatpush.bf16.msra.mxu0 %v1422
        %1432 = vmatmul.bf16.gmra.mxu0 %v1419
        %v1433 = vpop.f32.mrf.mxu0
        %v1434 = vadd.f32 0.0, %v1433
        %v1435 = vpop.f32.mrf.mxu0
        %1436 = vdwg.mxu0
        %v1438 = vsel %vm1105, %v1375, 0
        %v1441 = vsel %vm1298, %v1379, 0
        %1443 = vmatpush.bf16.msra.mxu0 0
        %1444 = vmatpush.bf16.msra.mxu0 0
        %1445 = vmatpush.bf16.msra.mxu0 0
        %1446 = vmatpush.bf16.msra.mxu0 0
        %1447 = vmatpush.bf16.msra.mxu0 0
        %1448 = vmatpush.bf16.msra.mxu0 0
        %1449 = vmatpush.bf16.msra.mxu0 0
        %1450 = vmatpush.bf16.msra.mxu0 %v1441
        %1451 = vmatmul.bf16.gmra.mxu0 %v1438
        %v1452 = vpop.f32.mrf.mxu0
        %v1453 = vadd.f32 0.0, %v1452
        %v1454 = vpop.f32.mrf.mxu0
        %1455 = vdwg.mxu0
        %v1456 = vsel %vm675, %v1396, 0.0
        %v1457 = vsel %vm675, %v1415, 0.0
        %v1458 = vadd.f32 %v1456, %v1457
        %v1459 = vsel %vm675, %v1434, 0.0
        %v1460 = vadd.f32 %v1458, %v1459
        %v1461 = vsel %vm675, %v1453, 0.0
        %v1462 = vadd.f32 %v1460, %v1461
        %v1463 = vadd.f32 %v661, %v1462
        %v1464 = vperm.slane %v662, 4
        %v1465 = vadd.f32 %v1463, %v1464
        %v1466 = vsel %vm675, %v1465, 0.0
        %1467 = vadd.xlane.f32.xlu0 %v1466
        %v1468 = vpop.xlane.xlu0 %1467
        %v1469 = vmul.f32 %v1468, %v685
        %v1470 = vsub.f32 %v1465, %v1469
        %v1471 = vmul.f32 %v1470, %v1470
        %v1472 = vsel %vm675, %v1471, 0.0
        %1473 = vadd.xlane.f32.xlu0 %v1472
        %v1474 = vpop.xlane.xlu0 %1473
        %v1475 = vmul.f32 %v1474, %v685
        %v1476 = vadd.f32 %v1475, 1e-05
        %v1477 = vrsqrt.pop %v1476
        %v1478 = vmul.f32 %v1477, %v1476
        %v1479 = vmul.f32 %v1478, %v1477
        %v1480 = vmul.f32 0.5, %v1479
        %v1481 = vsub.f32 1.5, %v1480
        %v1482 = vmul.f32 %v1477, %v1481
        %vm1483 = vweird.f32 %v1476
        %vm1484 = vweird.f32 %v1477
        %vm1485 = vmor %vm1483, %vm1484
        %v1486 = vsel %vm1485, %v1477, %v1482
        %v1487 = vmul.f32 %v1470, %v1486
        %v1488 = vperm.slane %v662, 2
        %v1489 = vmul.f32 %v1487, %v1488
        %v1490 = vperm.slane %v662, 3
        %v1491 = vadd.f32 %v1489, %v1490
        %v1492 = vpack.c.bf16 %v1491, %v1491
        %v1493 = vld [vmem:[%s638] sm:$0xf]
        %v1494 = vld [vmem:[%s638 + $0x4] sm:$0xf]
        %v1495 = vld [vmem:[%s638 + $0x8] sm:$0xf]
        %v1496 = vld [vmem:[%s638 + $0xc] sm:$0xf]
        %v1497 = vld [vmem:[%s641] sm:$0x1]
        %v1499 = vperm.slane %v1497, 0
        %v1505 = vunpack.c.l.b16 %v1493
        %v1506 = vunpack.c.l.b16 %v1494
        %v1507 = vunpack.c.l.b16 %v1495
        %v1508 = vunpack.c.l.b16 %v1496
        %v1509 = vpack.c.b16 %v1506, %v1505
        %v1510 = vpack.c.b16 %v1508, %v1507
        %v1514 = vsel %vm675, %v1492, 0
        %1516 = vmatpush.bf16.msra.mxu0 0
        %1517 = vmatpush.bf16.msra.mxu0 0
        %1518 = vmatpush.bf16.msra.mxu0 0
        %1519 = vmatpush.bf16.msra.mxu0 0
        %1520 = vmatpush.bf16.msra.mxu0 0
        %1521 = vmatpush.bf16.msra.mxu0 0
        %1522 = vmatpush.bf16.msra.mxu0 %v1510
        %1523 = vmatpush.bf16.msra.mxu0 %v1509
        %1524 = vmatmul.bf16.gmra.mxu0 %v1514
        %v1525 = vpop.f32.mrf.mxu0
        %v1526 = vadd.f32 %v1499, %v1525
        %v1527 = vpop.f32.mrf.mxu0
        %1528 = vdwg.mxu0
        %v1529 = vmul.f32 %v1526, 1.702
        %v1530 = vxor.u32 %v1529, 2147483648
        %v1531 = vmul.f32 %v1530, 1.442695
        %v1532 = vpow.pop %v1531
        %v1533 = vadd.f32 %v1532, 1.0
        %v1534 = vrcp.pop %v1533
        %v1535 = vmul.f32 %v1533, %v1534
        %v1536 = vsub.f32 1.0, %v1535
        %v1537 = vmul.f32 %v1534, %v1536
        %v1538 = vadd.f32 %v1534, %v1537
        %vm1539 = vweird.f32 %v1533
        %vm1540 = vweird.f32 %v1534
        %vm1541 = vmor %vm1539, %vm1540
        %v1542 = vsel %vm1541, %v1534, %v1538
        %v1543 = vand.u32 2147483647, %v1533
        %vm1544 = vcmp.eq.f32.partialorder %v1543, 8.507059e+37
        %v1545 = vand.u32 %v1533, 2147483648
        %v1546 = vor.u32 1.1754944e-38, %v1545
        %v1547 = vsel %vm1544, %v1546, %v1542
        %v1548 = vmul.f32 1.0, %v1547
        %v1549 = vmul.f32 %v1526, %v1548
        %v1550 = vpack.c.bf16 %v1549, %v1549
        %v1551 = vld [vmem:[%s646] sm:$0xf]
        %v1552 = vld [vmem:[%s646 + $0x4] sm:$0xf]
        %v1553 = vld [vmem:[%s646 + $0x8] sm:$0xf]
        %v1554 = vld [vmem:[%s646 + $0xc] sm:$0xf]
        %v1555 = vld [vmem:[%s646 + $0x10] sm:$0xf]
        %v1556 = vld [vmem:[%s646 + $0x14] sm:$0xf]
        %v1557 = vld [vmem:[%s646 + $0x18] sm:$0xf]
        %v1558 = vld [vmem:[%s646 + $0x1c] sm:$0xf]
        %v1559 = vld [vmem:[%s646 + $0x20] sm:$0xf]
        %v1560 = vld [vmem:[%s646 + $0x24] sm:$0xf]
        %v1561 = vld [vmem:[%s646 + $0x28] sm:$0xf]
        %v1562 = vld [vmem:[%s646 + $0x2c] sm:$0xf]
        %v1563 = vld [vmem:[%s646 + $0x30] sm:$0xf]
        %v1564 = vld [vmem:[%s646 + $0x34] sm:$0xf]
        %v1565 = vld [vmem:[%s646 + $0x38] sm:$0xf]
        %v1566 = vld [vmem:[%s646 + $0x3c] sm:$0xf]
        %v1583 = vunpack.c.l.b16 %v1551
        %v1584 = vunpack.c.l.b16 %v1552
        %v1585 = vunpack.c.l.b16 %v1553
        %v1586 = vunpack.c.l.b16 %v1554
        %v1587 = vunpack.c.l.b16 %v1555
        %v1588 = vunpack.c.l.b16 %v1556
        %v1589 = vunpack.c.l.b16 %v1557
        %v1590 = vunpack.c.l.b16 %v1558
        %v1591 = vunpack.c.l.b16 %v1559
        %v1592 = vunpack.c.l.b16 %v1560
        %v1593 = vunpack.c.l.b16 %v1561
        %v1594 = vunpack.c.l.b16 %v1562
        %v1595 = vunpack.c.l.b16 %v1563
        %v1596 = vunpack.c.l.b16 %v1564
        %v1597 = vunpack.c.l.b16 %v1565
        %v1598 = vunpack.c.l.b16 %v1566
        %v1599 = vpack.c.b16 %v1584, %v1583
        %v1600 = vpack.c.b16 %v1586, %v1585
        %v1601 = vpack.c.b16 %v1588, %v1587
        %v1602 = vpack.c.b16 %v1590, %v1589
        %v1603 = vpack.c.b16 %v1592, %v1591
        %v1604 = vpack.c.b16 %v1594, %v1593
        %v1605 = vpack.c.b16 %v1596, %v1595
        %v1606 = vpack.c.b16 %v1598, %v1597
        %1615 = vmatpush.bf16.msra.mxu0 %v1606
        %1616 = vmatpush.bf16.msra.mxu0 %v1605
        %1617 = vmatpush.bf16.msra.mxu0 %v1604
        %1618 = vmatpush.bf16.msra.mxu0 %v1603
        %1619 = vmatpush.bf16.msra.mxu0 %v1602
        %1620 = vmatpush.bf16.msra.mxu0 %v1601
        %1621 = vmatpush.bf16.msra.mxu0 %v1600
        %1622 = vmatpush.bf16.msra.mxu0 %v1599
        %1623 = vmatmul.bf16.gmra.mxu0 %v1550
        %v1624 = vpop.f32.mrf.mxu0
        %v1625 = vadd.f32 0.0, %v1624
        %v1626 = vpop.f32.mrf.mxu0
        %1627 = vdwg.mxu0
        %v1628 = vadd.f32 %v1465, %v1625
        %v1629 = vperm.slane %v662, 5
        %v1630 = vadd.f32 %v1628, %v1629
        %1631 = vst.msk [vmem:[#allocation2] sm:$0xff] %vm675, %v1630
        %p1632 = scmp.eq.s32.totalorder %s42, 1
        // Predicated region
        $region81: #{text_encoder.1} parent=75 // pred_check
          %p1633 = pneg %p1632
        $region82: #{text_encoder.1} parent=75 // pred_check_branch
          %1635 = sbr.rel (%p1633) target = $region84
        $region83: #{text_encoder.1} parent=75 // pred_region
          %v1636 = vld [vmem:[%s13] sm:$0x3]
          %v1637 = vld [vmem:[#allocation2] sm:$0xff]
          %v1638 = vsel %vm675, %v1637, 0.0
          %1639 = vadd.xlane.f32.xlu0 %v1638
          %v1640 = vpop.xlane.xlu0 %1639
          %v1641 = vmul.f32 %v1640, %v685
          %v1642 = vsub.f32 %v1637, %v1641
          %v1643 = vmul.f32 %v1642, %v1642
          %v1644 = vsel %vm675, %v1643, 0.0
          %1645 = vadd.xlane.f32.xlu0 %v1644
          %v1646 = vpop.xlane.xlu0 %1645
          %v1647 = vmul.f32 %v1646, %v685
          %v1648 = vadd.f32 %v1647, 1e-05
          %v1649 = vrsqrt.pop %v1648
          %v1650 = vmul.f32 %v1649, %v1648
          %v1651 = vmul.f32 %v1650, %v1649
          %v1652 = vmul.f32 0.5, %v1651
          %v1653 = vsub.f32 1.5, %v1652
          %v1654 = vmul.f32 %v1649, %v1653
          %vm1655 = vweird.f32 %v1648
          %vm1656 = vweird.f32 %v1649
          %vm1657 = vmor %vm1655, %vm1656
          %v1658 = vsel %vm1657, %v1649, %v1654
          %v1659 = vmul.f32 %v1642, %v1658
          %v1660 = vperm.slane %v1636, 0
          %v1661 = vmul.f32 %v1659, %v1660
          %v1662 = vperm.slane %v1636, 1
          %v1663 = vadd.f32 %v1661, %v1662
          %1664 = vst.msk [vmem:[#allocation2] sm:$0xff] %vm675, %v1663
          %s1665 = sld [smem:[#allocation4 + %s41]]
          %s1666 = scalar_lea.vmem [#allocation2], %s1665
          %v1667 = vld [vmem:[%s1666] sm:$0x1]
          %v1668 = vpack.c.bf16 %v1667, %v1667
          %v1669 = vld [vmem:[%s14] sm:$0xf]
          %v1670 = vld [vmem:[%s14 + $0x4] sm:$0xf]
          %v1671 = vld [vmem:[%s14 + $0x8] sm:$0xf]
          %v1672 = vld [vmem:[%s14 + $0xc] sm:$0xf]
          %v1677 = vunpack.c.l.b16 %v1669
          %v1678 = vunpack.c.l.b16 %v1670
          %v1679 = vunpack.c.l.b16 %v1671
          %v1680 = vunpack.c.l.b16 %v1672
          %v1681 = vpack.c.b16 %v1678, %v1677
          %v1682 = vpack.c.b16 %v1680, %v1679
          %v1686 = vsel %vm675, %v1668, 0
          %1688 = vmatpush.bf16.msra.mxu0 0
          %1689 = vmatpush.bf16.msra.mxu0 0
          %1690 = vmatpush.bf16.msra.mxu0 0
          %1691 = vmatpush.bf16.msra.mxu0 0
          %1692 = vmatpush.bf16.msra.mxu0 0
          %1693 = vmatpush.bf16.msra.mxu0 0
          %1694 = vmatpush.bf16.msra.mxu0 %v1682
          %1695 = vmatpush.bf16.msra.mxu0 %v1681
          %1696 = vmatmul.bf16.gmra.mxu0 %v1686
          %v1697 = vpop.f32.mrf.mxu0
          %v1698 = vadd.f32 0.0, %v1697
          %v1699 = vpop.f32.mrf.mxu0
          %1700 = vdwg.mxu0
          %1701 = vst [vmem:[%s605] sm:$0x1] %v1698
        $region84: #{text_encoder.1} parent=75 // pred_fallthru
          _
        %s1702 = sand.u32 %s401, 1
        %s1703 = scalar_lea.sflag [#allocation6], %s1702
        %s1704 = sand.u32 %s401, 1
        %s1705 = scalar_lea.vmem [#allocation5], %s1704
        // Predicated region
        $region85: #{text_encoder.1} parent=75 // pred_check
          %p1706 = pneg %p411
        $region86: #{text_encoder.1} parent=75 // pred_check_branch
          %1708 = sbr.rel (%p1706) target = $region88
        $region87: #{text_encoder.1} parent=75 // pred_region
          %1710 = vsyncadd %s1703, 0
          %s1711 = scalar_lea.hbm %s15, %s41
          %s1713 = sshll.u32 %s1705, 4
          %s1714 = int_to_ptr.vmem [resolvable:$true] %s1713
          %s1715 = sshll.u32 %s1711, 4
          %s1716 = int_to_ptr.hbm [resolvable:$true] %s1715
          %1718 = dma.vmem_to_hbm [thread:$0]  %s1714, 16, %s1716, %s1703
        $region88: #{text_encoder.1} parent=75 // pred_fallthru
          _
      $region76: #{text_encoder.1} parent=5 // pred_fallthru
        _
      %p1719 = scmp.le.s32.totalorder 2, %s32
      // Predicated region
      $region89: #{text_encoder.1} parent=5 // pred_check
        %p1720 = pneg %p1719
      $region90: #{text_encoder.1} parent=5 // pred_check_branch
        %1722 = sbr.rel (%p1720) target = $region92
      $region91: #{text_encoder.1} parent=5 // pred_region
        %s1723 = ssub.s32 %s32, 2
        // Predicated region
        $region93: #{text_encoder.1} parent=91 // pred_check
          %p1724 = pneg %p417
        $region94: #{text_encoder.1} parent=91 // pred_check_branch
          %1726 = sbr.rel (%p1724) target = $region96
        $region95: #{text_encoder.1} parent=91 // pred_region
          %s1727 = sand.u32 %s402, 1
          %s1728 = scalar_lea.sflag [#allocation6], %s1727
          %s1729 = sand.u32 %s402, 1
          %s1730 = scalar_lea.vmem [#allocation5], %s1729
          %1732 = dma.done %s1728, 16
        $region96: #{text_encoder.1} parent=91 // pred_fallthru
          _
      $region92: #{text_encoder.1} parent=5 // pred_fallthru
        _
    $region6: #{text_encoder.1} parent=1 // loop_footer
      %s36 = sadd.s32 1, %s32
    $region7: #{text_encoder.1} parent=1 // loop_footer_branch
      %31 = sbr.rel target = $region3
    $region8: #{text_encoder.1} parent=1 // loop_exit
      _
    %1733 = vsyncpa [#allocation6], 1
    %s1734 = scalar_lea.sflag [#allocation6], 1
    %1735 = vsyncpa %s1734, 1

</llo_original>
